<compile_context>
chip_gen: v7x
topology: tpu7x:2x2x1
jax: 0.10.0
libtpu: 0.0.40
codegen_flags: <defaults>
</compile_context>

<pallas_src>
import functools

import jax
import jax.numpy as jnp
from jax import lax
from jax.experimental import pallas as pl
from jax.experimental.pallas import tpu as pltpu

_LANE = 128
_NEG = -1e30  # finite "-inf" for max-pool padding (safe under bf16 casts / max)


def _round_up(n, m):
    return (n + m - 1) // m * m


def _pick_tile_h(H, tile_h=None):
    """Largest divisor of H that is <= 32; prefer >= 2 tiles so the grid pipelines."""
    if tile_h is not None:
        assert H % tile_h == 0
        return tile_h
    best = H
    for cand in range(min(H, 32), 0, -1):
        if H % cand == 0:
            best = cand
            break
    if best == H and H >= 2:
        for cand in range(H // 2, 0, -1):
            if H % cand == 0:
                best = cand
                break
    return best


def sppf_kernel(x_ref, w1_ref, b1_ref, w2_ref, b2_ref, out_ref, *, k, th, H):
    # Blocks:
    #   x_ref  : (1, H + 2*p3, W, C1)  f32   full H-zero-padded image of this sample
    #   w1_ref : (C1, c_p)             bf16  cv1 weight (BN folded, lane-padded)
    #   b1_ref : (1, c_p)              f32
    #   w2_ref : (4, c_p, c2p)         bf16  cv2 weight split into the 4 concat groups
    #   b2_ref : (1, c2p)              f32
    #   out_ref: (1, th, W, c2p)
    p1 = k // 2          # pad of pool k
    p2 = p1 + 1          # pad of pool k + 2
    p3 = p1 + 2          # pad of pool k + 4  (= row halo)
    thp = th + 2 * p3

    _, _, W, C1 = x_ref.shape
    c_p = w1_ref.shape[1]
    c2p = w2_ref.shape[2]

    h = pl.program_id(1)
    row0 = pl.multiple_of(h * th, th)          # tile start row in the H-padded image

    # ---- cv1: pointwise matmul (bf16 MXU operands, f32 acc) + folded-BN bias + SiLU ----
    xw = x_ref[0, pl.ds(row0, thp), :, :]                       # (thp, W, C1)
    x2 = xw.reshape(thp * W, C1).astype(jnp.bfloat16)
    t = jnp.dot(x2, w1_ref[...], preferred_element_type=jnp.float32) + b1_ref[...]
    t = t * jax.nn.sigmoid(t)                                   # SiLU, f32
    t = t.reshape(thp, W, c_p)

    # Halo rows outside the original image -> large negative (so max-pool ignores them).
    rows = lax.broadcasted_iota(jnp.int32, (thp, W, c_p), 0)
    orig_row = rows + (row0 - p3)
    t_m = jnp.where((orig_row >= 0) & (orig_row < H), t, _NEG)

    # ---- W pass: the three stride-1 'same' max pools, computed incrementally from
    #      ONE padded buffer (8 shifted slices total instead of 18). ----
    negw = jnp.full((thp, p3, c_p), _NEG, dtype=jnp.float32)
    tp = jnp.concatenate([negw, t_m, negw], axis=1)             # (thp, W + 2*p3, c_p)
    c_by_pad = {0: t_m}
    c = t_m
    for d in range(1, p3 + 1):
        lo = tp[:, p3 - d: p3 - d + W, :]
        hi = tp[:, p3 + d: p3 + d + W, :]
        c = jnp.maximum(c, jnp.maximum(lo, hi))
        c_by_pad[d] = c
    cw1, cw2, cw3 = c_by_pad[p1], c_by_pad[p2], c_by_pad[p3]

    # ---- H pass: cheap static slices along the leading (row) dim (halo provides pad). ----
    def row_pool(a, pw):
        out = a[p3 - pw: p3 - pw + th]
        for d in range(1, 2 * pw + 1):
            out = jnp.maximum(out, a[p3 - pw + d: p3 - pw + d + th])
        return out

    y1 = row_pool(cw1, p1)
    y2 = row_pool(cw2, p2)
    y3 = row_pool(cw3, p3)
    tc = t[p3: p3 + th]                                         # center rows (always valid)

    # ---- cv2 as 4 accumulated pointwise matmuls (channel concat eliminated). ----
    def pmm(a, gi):
        a2 = a.reshape(th * W, c_p).astype(jnp.bfloat16)
        return jnp.dot(a2, w2_ref[gi], preferred_element_type=jnp.float32)

    acc = pmm(tc, 0) + b2_ref[...]
    acc = acc + pmm(y1, 1)
    acc = acc + pmm(y2, 2)
    acc = acc + pmm(y3, 3)
    o = acc * jax.nn.sigmoid(acc)                               # SiLU
    out_ref[0] = o.reshape(th, W, c2p).astype(out_ref.dtype)


def sppf_enhanced_nhwc(x_nhwc, params, k=5, tile_h=None):
    """NHWC fast path (no layout transposes around the kernel). x: (N, H, W, C1)."""
    N, H, W, C1 = x_nhwc.shape
    w1, b1, w2, b2 = params["w1"], params["b1"], params["w2"], params["b2"]
    c_ = w1.shape[1]
    c2 = w2.shape[1]
    assert w2.shape[0] == 4 * c_

    p3 = k // 2 + 2
    th = _pick_tile_h(H, tile_h)
    Hp = H + 2 * p3

    # Pad channel dims to lane width so matmuls / output stores are lane-dense.
    c_p = _round_up(c_, _LANE)
    c2p = _round_up(c2, _LANE)

    def pad_to(a, shape, dtype):
        if tuple(a.shape) == tuple(shape) and a.dtype == dtype:
            return a
        out = jnp.zeros(shape, dtype)
        return out.at[tuple(slice(0, s) for s in a.shape)].set(a.astype(dtype))

    w1p = pad_to(w1, (C1, c_p), jnp.bfloat16)
    b1p = pad_to(b1, (1, c_p), jnp.float32)
    w2p = pad_to(w2.reshape(4, c_, c2), (4, c_p, c2p), jnp.bfloat16)
    b2p = pad_to(b2, (1, c2p), jnp.float32)

    # Zero-pad H once by the largest pool halo; halo rows are masked in-kernel.
    x_pad = jnp.pad(x_nhwc, ((0, 0), (p3, p3), (0, 0), (0, 0)))

    out = pl.pallas_call(
        functools.partial(sppf_kernel, k=k, th=th, H=H),
        out_shape=jax.ShapeDtypeStruct((N, H, W, c2p), x_nhwc.dtype),
        grid_spec=pltpu.PrefetchScalarGridSpec(
            num_scalar_prefetch=0,
            grid=(N, H // th),
            in_specs=[
                # Full per-sample image stays resident across the H-tile axis; the
                # kernel slices the (tile + halo) row window with pl.ds.
                # TODO(synk): for very large feature maps, switch to manual halo DMA
                # so the full image need not sit in VMEM.
                pl.BlockSpec((1, Hp, W, C1), lambda n, h: (n, 0, 0, 0)),
                pl.BlockSpec((C1, c_p), lambda n, h: (0, 0)),
                pl.BlockSpec((1, c_p), lambda n, h: (0, 0)),
                pl.BlockSpec((4, c_p, c2p), lambda n, h: (0, 0, 0)),
                pl.BlockSpec((1, c2p), lambda n, h: (0, 0)),
            ],
            out_specs=pl.BlockSpec((1, th, W, c2p), lambda n, h: (n, h, 0, 0)),
        ),
        compiler_params=pltpu.CompilerParams(
            dimension_semantics=("parallel", "parallel")),
    )(x_pad, w1p, b1p, w2p, b2p)

    if c2p != c2:
        out = out[..., :c2]
    return out


def sppf_enhanced(x_nchw, params, k=5, tile_h=None):
    """NCHW parity wrapper for the PyTorch module. In an NHWC pipeline call
    sppf_enhanced_nhwc directly and skip these two HBM-round-trip transposes."""
    x = jnp.transpose(x_nchw, (0, 2, 3, 1))
    out = sppf_enhanced_nhwc(x, params, k=k, tile_h=tile_h)
    return jnp.transpose(out, (0, 3, 1, 2))


def make_params(key, c1, c2):
    """Deterministic Conv(1x1, bias=False)+BN weights, folded into W/b."""
    c_ = c1 // 2
    ks = jax.random.split(key, 10)
    eps = 1e-3  # ultralytics uses BatchNorm2d(eps=0.001)

    def fold(wk, gk, bk, mk, vk, cin, cout):
        w = 0.1 * jax.random.normal(wk, (cin, cout), jnp.float32)   # (in, out)
        gamma = 1.0 + 0.1 * jax.random.normal(gk, (cout,), jnp.float32)
        beta = 0.1 * jax.random.normal(bk, (cout,), jnp.float32)
        mean = 0.1 * jax.random.normal(mk, (cout,), jnp.float32)
        var = jnp.abs(jax.random.normal(vk, (cout,), jnp.float32)) + 0.5
        scale = gamma / jnp.sqrt(var + eps)
        w_eff = w * scale[None, :]
        b_eff = (beta - mean * scale)[None, :]                      # (1, out)
        return w_eff, b_eff

    w1, b1 = fold(ks[0], ks[1], ks[2], ks[3], ks[4], c1, c_)
    w2, b2 = fold(ks[5], ks[6], ks[7], ks[8], ks[9], 4 * c_, c2)
    return {"w1": w1, "b1": b1, "w2": w2, "b2": b2}


def sppf_reference(x_nchw, params, k=5):
    """Pure-JAX f32 reference (reduce_window max pool) for validation."""
    x = jnp.transpose(x_nchw, (0, 2, 3, 1))
    t = jax.nn.silu(jnp.einsum("nhwc,cd->nhwd", x, params["w1"]) + params["b1"])

    def mp(a, kk):
        p = kk // 2
        return lax.reduce_window(
            a, -jnp.inf, lax.max,
            (1, kk, kk, 1), (1, 1, 1, 1),
            [(0, 0), (p, p), (p, p), (0, 0)])

    cat = jnp.concatenate([t, mp(t, k), mp(t, k + 2), mp(t, k + 4)], axis=-1)
    o = jax.nn.silu(jnp.einsum("nhwc,cd->nhwd", cat, params["w2"]) + params["b2"])
    return jnp.transpose(o, (0, 3, 1, 2))


if __name__ == "__main__":
    key = jax.random.PRNGKey(0)
    kx, kp = jax.random.split(key)

    N, C1, H, W = 2, 8, 16, 16
    C2 = 8
    x = jax.random.normal(kx, (N, C1, H, W), jnp.float32)
    params = make_params(kp, C1, C2)

    out = sppf_enhanced(x, params, k=5)
    out = jax.block_until_ready(out)

    ref = sppf_reference(x, params, k=5)
    assert out.shape == (N, C2, H, W), out.shape
    err = float(jnp.max(jnp.abs(out - ref)))
    # bf16 MXU operands with f32 accumulation -> relaxed tolerance vs the f32 reference.
    assert err < 2e-2, err
    print("KERNEL_OK")
</pallas_src>

<mosaic_0001>
module attributes {stable_mosaic.version = 11 : i64} {
  func.func @sppf_kernel(%arg0: i32, %arg1: i32, %arg2: memref<1x24x16x8xf32, #tpu.memory_space<vmem>>, %arg3: memref<8x128xbf16, #tpu.memory_space<vmem>>, %arg4: memref<1x128xf32, #tpu.memory_space<vmem>>, %arg5: memref<4x128x128xbf16, #tpu.memory_space<vmem>>, %arg6: memref<1x128xf32, #tpu.memory_space<vmem>>, %arg7: memref<1x8x16x128xf32, #tpu.memory_space<vmem>>) attributes {dimension_semantics = [#tpu.dimension_semantics<parallel>, #tpu.dimension_semantics<parallel>], iteration_bounds = array<i64: 2, 2>, scalar_prefetch = 0 : i64, scratch_operands = 0 : i64, tpu.core_type = #tpu.core_type<tc>, window_params = [{transform_indices = @transform_0, window_bounds = array<i64: 1, 24, 16, 8>}, {pipeline_mode = #tpu.pipeline_mode<synchronous>, transform_indices = @transform_1, window_bounds = array<i64: 8, 128>}, {pipeline_mode = #tpu.pipeline_mode<synchronous>, transform_indices = @transform_2, window_bounds = array<i64: 1, 128>}, {pipeline_mode = #tpu.pipeline_mode<synchronous>, transform_indices = @transform_3, window_bounds = array<i64: 4, 128, 128>}, {pipeline_mode = #tpu.pipeline_mode<synchronous>, transform_indices = @transform_4, window_bounds = array<i64: 1, 128>}, {transform_indices = @transform_5, window_bounds = array<i64: 1, 8, 16, 128>}]} {
    %c8_i32 = arith.constant 8 : i32
    %0 = arith.muli %arg1, %c8_i32 : i32
    %1 = tpu.assume_multiple %0, 8 : i32
    %c0 = arith.constant 0 : index
    %2 = arith.index_cast %1 : i32 to index
    %c0_0 = arith.constant 0 : index
    %c0_1 = arith.constant 0 : index
    %3 = vector.load %arg2[%c0, %2, %c0_0, %c0_1] : memref<1x24x16x8xf32, #tpu.memory_space<vmem>>, vector<1x16x16x8xf32>
    %4 = vector.shape_cast %3 : vector<1x16x16x8xf32> to vector<16x16x8xf32>
    %5 = vector.shape_cast %4 : vector<16x16x8xf32> to vector<256x8xf32>
    %6 = arith.truncf %5 : vector<256x8xf32> to vector<256x8xbf16>
    %c0_2 = arith.constant 0 : index
    %c0_3 = arith.constant 0 : index
    %7 = vector.load %arg3[%c0_2, %c0_3] : memref<8x128xbf16, #tpu.memory_space<vmem>>, vector<8x128xbf16>
    %cst = arith.constant dense<0.000000e+00> : vector<256x128xf32>
    %8 = tpu.matmul %6, %7, %cst {dimension_numbers = #tpu.dot_dimension_numbers<[1], [0], [0], [1], [0, 0, 1, 1], [], []>} : vector<256x8xbf16>, vector<8x128xbf16>, vector<256x128xf32> -> vector<256x128xf32>
    %c0_4 = arith.constant 0 : index
    %c0_5 = arith.constant 0 : index
    %9 = vector.load %arg4[%c0_4, %c0_5] : memref<1x128xf32, #tpu.memory_space<vmem>>, vector<1x128xf32>
    %10 = vector.broadcast %9 : vector<1x128xf32> to vector<256x128xf32>
    %11 = arith.addf %8, %10 : vector<256x128xf32>
    %12 = arith.negf %11 : vector<256x128xf32>
    %13 = math.exp %12 : vector<256x128xf32>
    %cst_6 = arith.constant 1.000000e+00 : f32
    %14 = vector.broadcast %cst_6 : f32 to vector<256x128xf32>
    %15 = arith.addf %14, %13 : vector<256x128xf32>
    %16 = arith.divf %14, %15 : vector<256x128xf32>
    %17 = arith.mulf %11, %16 : vector<256x128xf32>
    %18 = vector.shape_cast %17 : vector<256x128xf32> to vector<16x16x128xf32>
    %19 = tpu.iota {dimensions = array<i32: 0>} : vector<16x16x128xi32>
    %c4_i32 = arith.constant 4 : i32
    %20 = arith.subi %1, %c4_i32 : i32
    %21 = vector.broadcast %20 : i32 to vector<16x16x128xi32>
    %22 = arith.addi %19, %21 : vector<16x16x128xi32>
    %c0_i32 = arith.constant 0 : i32
    %23 = vector.broadcast %c0_i32 : i32 to vector<16x16x128xi32>
    %24 = arith.cmpi sge, %22, %23 : vector<16x16x128xi32>
    %c16_i32 = arith.constant 16 : i32
    %25 = vector.broadcast %c16_i32 : i32 to vector<16x16x128xi32>
    %26 = arith.cmpi slt, %22, %25 : vector<16x16x128xi32>
    %27 = arith.andi %24, %26 : vector<16x16x128xi1>
    %cst_7 = arith.constant -1.000000e+30 : f32
    %28 = vector.broadcast %cst_7 : f32 to vector<16x16x128xf32>
    %29 = arith.select %27, %18, %28 : vector<16x16x128xi1>, vector<16x16x128xf32>
    %cst_8 = arith.constant -1.000000e+30 : f32
    %30 = vector.broadcast %cst_8 : f32 to vector<16x4x128xf32>
    %31 = tpu.concatenate %30, %29, %30 in 1 : vector<16x4x128xf32>, vector<16x16x128xf32>, vector<16x4x128xf32> -> vector<16x24x128xf32>
    %32 = vector.extract_strided_slice %31 {offsets = [0, 3, 0], sizes = [16, 16, 128], strides = [1, 1, 1]} : vector<16x24x128xf32> to vector<16x16x128xf32>
    %33 = vector.extract_strided_slice %31 {offsets = [0, 5, 0], sizes = [16, 16, 128], strides = [1, 1, 1]} : vector<16x24x128xf32> to vector<16x16x128xf32>
    %34 = arith.maximumf %32, %33 : vector<16x16x128xf32>
    %35 = arith.maximumf %29, %34 : vector<16x16x128xf32>
    %36 = vector.extract_strided_slice %31 {offsets = [0, 2, 0], sizes = [16, 16, 128], strides = [1, 1, 1]} : vector<16x24x128xf32> to vector<16x16x128xf32>
    %37 = vector.extract_strided_slice %31 {offsets = [0, 6, 0], sizes = [16, 16, 128], strides = [1, 1, 1]} : vector<16x24x128xf32> to vector<16x16x128xf32>
    %38 = arith.maximumf %36, %37 : vector<16x16x128xf32>
    %39 = arith.maximumf %35, %38 : vector<16x16x128xf32>
    %40 = vector.extract_strided_slice %31 {offsets = [0, 1, 0], sizes = [16, 16, 128], strides = [1, 1, 1]} : vector<16x24x128xf32> to vector<16x16x128xf32>
    %41 = vector.extract_strided_slice %31 {offsets = [0, 7, 0], sizes = [16, 16, 128], strides = [1, 1, 1]} : vector<16x24x128xf32> to vector<16x16x128xf32>
    %42 = arith.maximumf %40, %41 : vector<16x16x128xf32>
    %43 = arith.maximumf %39, %42 : vector<16x16x128xf32>
    %44 = vector.extract_strided_slice %31 {offsets = [0, 0, 0], sizes = [16, 16, 128], strides = [1, 1, 1]} : vector<16x24x128xf32> to vector<16x16x128xf32>
    %45 = vector.extract_strided_slice %31 {offsets = [0, 8, 0], sizes = [16, 16, 128], strides = [1, 1, 1]} : vector<16x24x128xf32> to vector<16x16x128xf32>
    %46 = arith.maximumf %44, %45 : vector<16x16x128xf32>
    %47 = arith.maximumf %43, %46 : vector<16x16x128xf32>
    %48 = vector.extract_strided_slice %39 {offsets = [2, 0, 0], sizes = [8, 16, 128], strides = [1, 1, 1]} : vector<16x16x128xf32> to vector<8x16x128xf32>
    %49 = vector.extract_strided_slice %39 {offsets = [3, 0, 0], sizes = [8, 16, 128], strides = [1, 1, 1]} : vector<16x16x128xf32> to vector<8x16x128xf32>
    %50 = arith.maximumf %48, %49 : vector<8x16x128xf32>
    %51 = vector.extract_strided_slice %39 {offsets = [4, 0, 0], sizes = [8, 16, 128], strides = [1, 1, 1]} : vector<16x16x128xf32> to vector<8x16x128xf32>
    %52 = arith.maximumf %50, %51 : vector<8x16x128xf32>
    %53 = vector.extract_strided_slice %39 {offsets = [5, 0, 0], sizes = [8, 16, 128], strides = [1, 1, 1]} : vector<16x16x128xf32> to vector<8x16x128xf32>
    %54 = arith.maximumf %52, %53 : vector<8x16x128xf32>
    %55 = vector.extract_strided_slice %39 {offsets = [6, 0, 0], sizes = [8, 16, 128], strides = [1, 1, 1]} : vector<16x16x128xf32> to vector<8x16x128xf32>
    %56 = arith.maximumf %54, %55 : vector<8x16x128xf32>
    %57 = vector.extract_strided_slice %43 {offsets = [1, 0, 0], sizes = [8, 16, 128], strides = [1, 1, 1]} : vector<16x16x128xf32> to vector<8x16x128xf32>
    %58 = vector.extract_strided_slice %43 {offsets = [2, 0, 0], sizes = [8, 16, 128], strides = [1, 1, 1]} : vector<16x16x128xf32> to vector<8x16x128xf32>
    %59 = arith.maximumf %57, %58 : vector<8x16x128xf32>
    %60 = vector.extract_strided_slice %43 {offsets = [3, 0, 0], sizes = [8, 16, 128], strides = [1, 1, 1]} : vector<16x16x128xf32> to vector<8x16x128xf32>
    %61 = arith.maximumf %59, %60 : vector<8x16x128xf32>
    %62 = vector.extract_strided_slice %43 {offsets = [4, 0, 0], sizes = [8, 16, 128], strides = [1, 1, 1]} : vector<16x16x128xf32> to vector<8x16x128xf32>
    %63 = arith.maximumf %61, %62 : vector<8x16x128xf32>
    %64 = vector.extract_strided_slice %43 {offsets = [5, 0, 0], sizes = [8, 16, 128], strides = [1, 1, 1]} : vector<16x16x128xf32> to vector<8x16x128xf32>
    %65 = arith.maximumf %63, %64 : vector<8x16x128xf32>
    %66 = vector.extract_strided_slice %43 {offsets = [6, 0, 0], sizes = [8, 16, 128], strides = [1, 1, 1]} : vector<16x16x128xf32> to vector<8x16x128xf32>
    %67 = arith.maximumf %65, %66 : vector<8x16x128xf32>
    %68 = vector.extract_strided_slice %43 {offsets = [7, 0, 0], sizes = [8, 16, 128], strides = [1, 1, 1]} : vector<16x16x128xf32> to vector<8x16x128xf32>
    %69 = arith.maximumf %67, %68 : vector<8x16x128xf32>
    %70 = vector.extract_strided_slice %47 {offsets = [0, 0, 0], sizes = [8, 16, 128], strides = [1, 1, 1]} : vector<16x16x128xf32> to vector<8x16x128xf32>
    %71 = vector.extract_strided_slice %47 {offsets = [1, 0, 0], sizes = [8, 16, 128], strides = [1, 1, 1]} : vector<16x16x128xf32> to vector<8x16x128xf32>
    %72 = arith.maximumf %70, %71 : vector<8x16x128xf32>
    %73 = vector.extract_strided_slice %47 {offsets = [2, 0, 0], sizes = [8, 16, 128], strides = [1, 1, 1]} : vector<16x16x128xf32> to vector<8x16x128xf32>
    %74 = arith.maximumf %72, %73 : vector<8x16x128xf32>
    %75 = vector.extract_strided_slice %47 {offsets = [3, 0, 0], sizes = [8, 16, 128], strides = [1, 1, 1]} : vector<16x16x128xf32> to vector<8x16x128xf32>
    %76 = arith.maximumf %74, %75 : vector<8x16x128xf32>
    %77 = vector.extract_strided_slice %47 {offsets = [4, 0, 0], sizes = [8, 16, 128], strides = [1, 1, 1]} : vector<16x16x128xf32> to vector<8x16x128xf32>
    %78 = arith.maximumf %76, %77 : vector<8x16x128xf32>
    %79 = vector.extract_strided_slice %47 {offsets = [5, 0, 0], sizes = [8, 16, 128], strides = [1, 1, 1]} : vector<16x16x128xf32> to vector<8x16x128xf32>
    %80 = arith.maximumf %78, %79 : vector<8x16x128xf32>
    %81 = vector.extract_strided_slice %47 {offsets = [6, 0, 0], sizes = [8, 16, 128], strides = [1, 1, 1]} : vector<16x16x128xf32> to vector<8x16x128xf32>
    %82 = arith.maximumf %80, %81 : vector<8x16x128xf32>
    %83 = vector.extract_strided_slice %47 {offsets = [7, 0, 0], sizes = [8, 16, 128], strides = [1, 1, 1]} : vector<16x16x128xf32> to vector<8x16x128xf32>
    %84 = arith.maximumf %82, %83 : vector<8x16x128xf32>
    %85 = vector.extract_strided_slice %47 {offsets = [8, 0, 0], sizes = [8, 16, 128], strides = [1, 1, 1]} : vector<16x16x128xf32> to vector<8x16x128xf32>
    %86 = arith.maximumf %84, %85 : vector<8x16x128xf32>
    %87 = vector.extract_strided_slice %18 {offsets = [4, 0, 0], sizes = [8, 16, 128], strides = [1, 1, 1]} : vector<16x16x128xf32> to vector<8x16x128xf32>
    %88 = vector.shape_cast %87 : vector<8x16x128xf32> to vector<128x128xf32>
    %89 = arith.truncf %88 : vector<128x128xf32> to vector<128x128xbf16>
    %c0_9 = arith.constant 0 : index
    %c0_10 = arith.constant 0 : index
    %c0_11 = arith.constant 0 : index
    %90 = vector.load %arg5[%c0_9, %c0_10, %c0_11] : memref<4x128x128xbf16, #tpu.memory_space<vmem>>, vector<1x128x128xbf16>
    %91 = vector.shape_cast %90 : vector<1x128x128xbf16> to vector<128x128xbf16>
    %cst_12 = arith.constant dense<0.000000e+00> : vector<128x128xf32>
    %92 = tpu.matmul %89, %91, %cst_12 {dimension_numbers = #tpu.dot_dimension_numbers<[1], [0], [0], [1], [0, 0, 1, 1], [], []>} : vector<128x128xbf16>, vector<128x128xbf16>, vector<128x128xf32> -> vector<128x128xf32>
    %c0_13 = arith.constant 0 : index
    %c0_14 = arith.constant 0 : index
    %93 = vector.load %arg6[%c0_13, %c0_14] : memref<1x128xf32, #tpu.memory_space<vmem>>, vector<1x128xf32>
    %94 = vector.broadcast %93 : vector<1x128xf32> to vector<128x128xf32>
    %95 = arith.addf %92, %94 : vector<128x128xf32>
    %96 = vector.shape_cast %56 : vector<8x16x128xf32> to vector<128x128xf32>
    %97 = arith.truncf %96 : vector<128x128xf32> to vector<128x128xbf16>
    %c1 = arith.constant 1 : index
    %c0_15 = arith.constant 0 : index
    %c0_16 = arith.constant 0 : index
    %98 = vector.load %arg5[%c1, %c0_15, %c0_16] : memref<4x128x128xbf16, #tpu.memory_space<vmem>>, vector<1x128x128xbf16>
    %99 = vector.shape_cast %98 : vector<1x128x128xbf16> to vector<128x128xbf16>
    %cst_17 = arith.constant dense<0.000000e+00> : vector<128x128xf32>
    %100 = tpu.matmul %97, %99, %cst_17 {dimension_numbers = #tpu.dot_dimension_numbers<[1], [0], [0], [1], [0, 0, 1, 1], [], []>} : vector<128x128xbf16>, vector<128x128xbf16>, vector<128x128xf32> -> vector<128x128xf32>
    %101 = arith.addf %95, %100 : vector<128x128xf32>
    %102 = vector.shape_cast %69 : vector<8x16x128xf32> to vector<128x128xf32>
    %103 = arith.truncf %102 : vector<128x128xf32> to vector<128x128xbf16>
    %c2 = arith.constant 2 : index
    %c0_18 = arith.constant 0 : index
    %c0_19 = arith.constant 0 : index
    %104 = vector.load %arg5[%c2, %c0_18, %c0_19] : memref<4x128x128xbf16, #tpu.memory_space<vmem>>, vector<1x128x128xbf16>
    %105 = vector.shape_cast %104 : vector<1x128x128xbf16> to vector<128x128xbf16>
    %cst_20 = arith.constant dense<0.000000e+00> : vector<128x128xf32>
    %106 = tpu.matmul %103, %105, %cst_20 {dimension_numbers = #tpu.dot_dimension_numbers<[1], [0], [0], [1], [0, 0, 1, 1], [], []>} : vector<128x128xbf16>, vector<128x128xbf16>, vector<128x128xf32> -> vector<128x128xf32>
    %107 = arith.addf %101, %106 : vector<128x128xf32>
    %108 = vector.shape_cast %86 : vector<8x16x128xf32> to vector<128x128xf32>
    %109 = arith.truncf %108 : vector<128x128xf32> to vector<128x128xbf16>
    %c3 = arith.constant 3 : index
    %c0_21 = arith.constant 0 : index
    %c0_22 = arith.constant 0 : index
    %110 = vector.load %arg5[%c3, %c0_21, %c0_22] : memref<4x128x128xbf16, #tpu.memory_space<vmem>>, vector<1x128x128xbf16>
    %111 = vector.shape_cast %110 : vector<1x128x128xbf16> to vector<128x128xbf16>
    %cst_23 = arith.constant dense<0.000000e+00> : vector<128x128xf32>
    %112 = tpu.matmul %109, %111, %cst_23 {dimension_numbers = #tpu.dot_dimension_numbers<[1], [0], [0], [1], [0, 0, 1, 1], [], []>} : vector<128x128xbf16>, vector<128x128xbf16>, vector<128x128xf32> -> vector<128x128xf32>
    %113 = arith.addf %107, %112 : vector<128x128xf32>
    %114 = arith.negf %113 : vector<128x128xf32>
    %115 = math.exp %114 : vector<128x128xf32>
    %cst_24 = arith.constant 1.000000e+00 : f32
    %116 = vector.broadcast %cst_24 : f32 to vector<128x128xf32>
    %117 = arith.addf %116, %115 : vector<128x128xf32>
    %118 = arith.divf %116, %117 : vector<128x128xf32>
    %119 = arith.mulf %113, %118 : vector<128x128xf32>
    %120 = vector.shape_cast %119 : vector<128x128xf32> to vector<8x16x128xf32>
    %c0_25 = arith.constant 0 : index
    %c0_26 = arith.constant 0 : index
    %c0_27 = arith.constant 0 : index
    %c0_28 = arith.constant 0 : index
    %121 = vector.load %arg7[%c0_25, %c0_26, %c0_27, %c0_28] : memref<1x8x16x128xf32, #tpu.memory_space<vmem>>, vector<1x8x16x128xf32>
    %122 = vector.shape_cast %121 : vector<1x8x16x128xf32> to vector<8x16x128xf32>
    %123 = vector.shape_cast %120 : vector<8x16x128xf32> to vector<1x8x16x128xf32>
    tpu.vector_store %arg7[%c0_25, %c0_26, %c0_27, %c0_28], %123 {strides = array<i32>} : memref<1x8x16x128xf32, #tpu.memory_space<vmem>>, vector<1x8x16x128xf32>,
    return
  }
  func.func @transform_0(%arg0: i32, %arg1: i32) -> (i32, i32, i32, i32) {
    %c0_i32 = arith.constant 0 : i32
    %c0_i32_0 = arith.constant 0 : i32
    %c0_i32_1 = arith.constant 0 : i32
    %c0_i32_2 = arith.constant 0 : i32
    return %arg0, %c0_i32, %c0_i32_0, %c0_i32_1 : i32, i32, i32, i32
  }
  func.func @transform_1(%arg0: i32, %arg1: i32) -> (i32, i32) {
    %c0_i32 = arith.constant 0 : i32
    %c0_i32_0 = arith.constant 0 : i32
    %c0_i32_1 = arith.constant 0 : i32
    return %c0_i32, %c0_i32_0 : i32, i32
  }
  func.func @transform_2(%arg0: i32, %arg1: i32) -> (i32, i32) {
    %c0_i32 = arith.constant 0 : i32
    %c0_i32_0 = arith.constant 0 : i32
    %c0_i32_1 = arith.constant 0 : i32
    return %c0_i32, %c0_i32_0 : i32, i32
  }
  func.func @transform_3(%arg0: i32, %arg1: i32) -> (i32, i32, i32) {
    %c0_i32 = arith.constant 0 : i32
    %c0_i32_0 = arith.constant 0 : i32
    %c0_i32_1 = arith.constant 0 : i32
    %c0_i32_2 = arith.constant 0 : i32
    return %c0_i32, %c0_i32_0, %c0_i32_1 : i32, i32, i32
  }
  func.func @transform_4(%arg0: i32, %arg1: i32) -> (i32, i32) {
    %c0_i32 = arith.constant 0 : i32
    %c0_i32_0 = arith.constant 0 : i32
    %c0_i32_1 = arith.constant 0 : i32
    return %c0_i32, %c0_i32_0 : i32, i32
  }
  func.func @transform_5(%arg0: i32, %arg1: i32) -> (i32, i32, i32, i32) {
    %c0_i32 = arith.constant 0 : i32
    %c0_i32_0 = arith.constant 0 : i32
    %c0_i32_1 = arith.constant 0 : i32
    return %arg0, %arg1, %c0_i32, %c0_i32_0 : i32, i32, i32, i32
  }
}

</mosaic_0001>

<llo_original>
// kernel: tpu_custom_call.1
$region0: #{tpu_custom_call.1}
  #allocation0 [shape = 'u32[]', space=smem, size = 0x4, offset = 0x4, fixed_abs, tag = 'smem constant byte address 0x4 - core index']
  #allocation1 [shape = 'u32[144,128]{1,0:T(1,128)}', space=vmem, size = 0x12000, scoped, tag = 'internal scratch']
  %s0 = inlined_call_operand.vmem [shape: f32[2,24,16,8], index: 0, kind: input, shape index: {}]
  %s1 = inlined_call_operand.vmem [shape: bf16[8,128], index: 1, kind: input, shape index: {}]
  %s2 = inlined_call_operand.vmem [shape: f32[1,128], index: 2, kind: input, shape index: {}]
  %s3 = inlined_call_operand.vmem [shape: bf16[4,128,128], index: 3, kind: input, shape index: {}]
  %s4 = inlined_call_operand.vmem [shape: f32[1,128], index: 4, kind: input, shape index: {}]
  %s5 = inlined_call_operand.hbm [shape: f32[2,16,16,128], index: 5, kind: output, shape index: {}]
  %s6 = sld [smem:[#allocation0]]
  $region53: #{tpu_custom_call.1} parent=0
    _
  %s8 = ssub.s32 1, %s6
  %s9 = scalar_select 0, %s8, %s6
  $region1: #{tpu_custom_call.1} parent=0
    #allocation2 [shape = 'u8[131072]{0}', space=vmem, size = 0x20000, scoped, tag = 'output window, operand 0']
    #allocation3 [shape = 's32[2]{0}', space=sflag, size = 0x8, scoped, tag = 'scoped memory for tpu_custom_call.1']
    %10 = vsyncpa [#allocation3], 0
    %s11 = scalar_lea.sflag [#allocation3], 1
    %12 = vsyncpa %s11, 0
    loop: start=0, step=1, limit=6
    $region2: #{tpu_custom_call.1} parent=1 // loop_pre_header
      _
    $region3: #{tpu_custom_call.1} parent=1 // loop_header
      %s14 = sphi 0, %s18
      %p15 = scmp.ge.s32.totalorder %s14, 6
      %s21 = sphi 0, %s33
      %s22 = sphi 0, %s29
      %s23 = sphi 0, %s21
      %s24 = sphi 0, %s22
      %s25 = sphi 0, %s23
      %s26 = sphi 0, %s24
      %s36 = sphi 0, %s38
      %s39 = sphi 0, %s36
      %s40 = sphi 0, %s39
      %s56 = sphi 0, %s40
      %s60 = sphi 0, %s60
      %s62 = sphi 0, %s60
      %s63 = sphi 0, %s62
      %s77 = sphi 0, %s63
      %s81 = sphi 0, %s81
      %s83 = sphi 0, %s81
      %s84 = sphi 0, %s83
      %s98 = sphi 0, %s84
      %s102 = sphi 0, %s102
      %s104 = sphi 0, %s102
      %s105 = sphi 0, %s104
      %s119 = sphi 0, %s105
      %s123 = sphi 0, %s123
      %s125 = sphi 0, %s123
      %s126 = sphi 0, %s125
      %s140 = sphi 0, %s126
      %s148 = sphi 0, %s150
      %s151 = sphi 0, %s148
      %s152 = sphi 0, %s151
      %s168 = sphi 0, %s152
    $region4: #{tpu_custom_call.1} parent=1 // loop_header_branch
      %17 = sbr.rel (%p15) target = $region8
    $region5: #{tpu_custom_call.1} parent=1 // loop_body
      %s19 = ssub.s32 %s14, 1
      %s20 = ssub.s32 %s14, 2
      %s27 = sadd.s32 1, %s22
      %p28 = scmp.ge.s32.totalorder %s27, 2
      %s29 = scalar_select %p28, 0, %s27
      %s30 = sadd.s32 1, %s21
      %s31 = scalar_select %p28, %s30, %s21
      %p32 = scmp.ge.s32.totalorder %s31, 2
      %s33 = scalar_select %p32, 0, %s31
      %s34 = ssub.s32 %s21, %s33
      %p35 = scmp.eq.s32.totalorder %s34, 0
      %s37 = sadd.s32 %s36, 1
      %s38 = scalar_select %p35, %s36, %s37
      %p41 = pneg %p35
      %p42 = scmp.eq.s32.totalorder %s14, 3
      %p43 = por %p41, %p42
      %p44 = scmp.ne.s32.totalorder %s36, %s39
      %p45 = scmp.eq.s32.totalorder %s14, 0
      %p46 = por %p44, %p45
      %p47 = scmp.ne.s32.totalorder %s36, %s39
      %p48 = scmp.eq.s32.totalorder %s19, 3
      %p49 = por %p47, %p48
      %p50 = scmp.ne.s32.totalorder %s39, %s40
      %p51 = scmp.eq.s32.totalorder %s19, 0
      %p52 = por %p50, %p51
      %p53 = scmp.ne.s32.totalorder %s39, %s40
      %p54 = scmp.eq.s32.totalorder %s20, 3
      %p55 = por %p53, %p54
      %p57 = scmp.ne.s32.totalorder %s40, %s56
      %p58 = scmp.eq.s32.totalorder %s20, 0
      %p59 = por %p57, %p58
      %s61 = sadd.s32 %s60, 1
      %p64 = scmp.eq.s32.totalorder %s14, 3
      %p65 = scmp.ne.s32.totalorder %s60, %s62
      %p66 = scmp.eq.s32.totalorder %s14, 0
      %p67 = por %p65, %p66
      %p68 = scmp.ne.s32.totalorder %s60, %s62
      %p69 = scmp.eq.s32.totalorder %s19, 3
      %p70 = por %p68, %p69
      %p71 = scmp.ne.s32.totalorder %s62, %s63
      %p72 = scmp.eq.s32.totalorder %s19, 0
      %p73 = por %p71, %p72
      %p74 = scmp.ne.s32.totalorder %s62, %s63
      %p75 = scmp.eq.s32.totalorder %s20, 3
      %p76 = por %p74, %p75
      %p78 = scmp.ne.s32.totalorder %s63, %s77
      %p79 = scmp.eq.s32.totalorder %s20, 0
      %p80 = por %p78, %p79
      %s82 = sadd.s32 %s81, 1
      %p85 = scmp.eq.s32.totalorder %s14, 3
      %p86 = scmp.ne.s32.totalorder %s81, %s83
      %p87 = scmp.eq.s32.totalorder %s14, 0
      %p88 = por %p86, %p87
      %p89 = scmp.ne.s32.totalorder %s81, %s83
      %p90 = scmp.eq.s32.totalorder %s19, 3
      %p91 = por %p89, %p90
      %p92 = scmp.ne.s32.totalorder %s83, %s84
      %p93 = scmp.eq.s32.totalorder %s19, 0
      %p94 = por %p92, %p93
      %p95 = scmp.ne.s32.totalorder %s83, %s84
      %p96 = scmp.eq.s32.totalorder %s20, 3
      %p97 = por %p95, %p96
      %p99 = scmp.ne.s32.totalorder %s84, %s98
      %p100 = scmp.eq.s32.totalorder %s20, 0
      %p101 = por %p99, %p100
      %s103 = sadd.s32 %s102, 1
      %p106 = scmp.eq.s32.totalorder %s14, 3
      %p107 = scmp.ne.s32.totalorder %s102, %s104
      %p108 = scmp.eq.s32.totalorder %s14, 0
      %p109 = por %p107, %p108
      %p110 = scmp.ne.s32.totalorder %s102, %s104
      %p111 = scmp.eq.s32.totalorder %s19, 3
      %p112 = por %p110, %p111
      %p113 = scmp.ne.s32.totalorder %s104, %s105
      %p114 = scmp.eq.s32.totalorder %s19, 0
      %p115 = por %p113, %p114
      %p116 = scmp.ne.s32.totalorder %s104, %s105
      %p117 = scmp.eq.s32.totalorder %s20, 3
      %p118 = por %p116, %p117
      %p120 = scmp.ne.s32.totalorder %s105, %s119
      %p121 = scmp.eq.s32.totalorder %s20, 0
      %p122 = por %p120, %p121
      %s124 = sadd.s32 %s123, 1
      %p127 = scmp.eq.s32.totalorder %s14, 3
      %p128 = scmp.ne.s32.totalorder %s123, %s125
      %p129 = scmp.eq.s32.totalorder %s14, 0
      %p130 = por %p128, %p129
      %p131 = scmp.ne.s32.totalorder %s123, %s125
      %p132 = scmp.eq.s32.totalorder %s19, 3
      %p133 = por %p131, %p132
      %p134 = scmp.ne.s32.totalorder %s125, %s126
      %p135 = scmp.eq.s32.totalorder %s19, 0
      %p136 = por %p134, %p135
      %p137 = scmp.ne.s32.totalorder %s125, %s126
      %p138 = scmp.eq.s32.totalorder %s20, 3
      %p139 = por %p137, %p138
      %p141 = scmp.ne.s32.totalorder %s126, %s140
      %p142 = scmp.eq.s32.totalorder %s20, 0
      %p143 = por %p141, %p142
      %s144 = ssub.s32 %s21, %s33
      %s145 = ssub.s32 %s22, %s29
      %s146 = sor.u32 %s144, %s145
      %p147 = scmp.eq.s32.totalorder %s146, 0
      %s149 = sadd.s32 %s148, 1
      %s150 = scalar_select %p147, %s148, %s149
      %p153 = pneg %p147
      %p154 = scmp.eq.s32.totalorder %s14, 3
      %p155 = por %p153, %p154
      %p156 = scmp.ne.s32.totalorder %s148, %s151
      %p157 = scmp.eq.s32.totalorder %s14, 0
      %p158 = por %p156, %p157
      %p159 = scmp.ne.s32.totalorder %s148, %s151
      %p160 = scmp.eq.s32.totalorder %s19, 3
      %p161 = por %p159, %p160
      %p162 = scmp.ne.s32.totalorder %s151, %s152
      %p163 = scmp.eq.s32.totalorder %s19, 0
      %p164 = por %p162, %p163
      %p165 = scmp.ne.s32.totalorder %s151, %s152
      %p166 = scmp.eq.s32.totalorder %s20, 3
      %p167 = por %p165, %p166
      %p169 = scmp.ne.s32.totalorder %s152, %s168
      %p170 = scmp.eq.s32.totalorder %s20, 0
      %p171 = por %p169, %p170
      %p172 = scmp.le.s32.totalorder 1, %s14
      %p173 = scmp.lt.s32.totalorder %s14, 5
      %p174 = pnand %p172, %p173
      %p175 = pneg %p174
      // Predicated region
      $region9: #{tpu_custom_call.1} parent=5 // pred_check
        _
      $region10: #{tpu_custom_call.1} parent=5 // pred_check_branch
        %177 = sbr.rel (%p174) target = $region12
      $region11: #{tpu_custom_call.1} parent=5 // pred_region
        %s178 = ssub.s32 %s14, 1
        // Predicated region
        $region13: #{tpu_custom_call.1} parent=11 // pred_check
          %p179 = pneg %p73
        $region14: #{tpu_custom_call.1} parent=11 // pred_check_branch
          %181 = sbr.rel (%p179) target = $region16
        $region15: #{tpu_custom_call.1} parent=11 // pred_region
          _
        $region16: #{tpu_custom_call.1} parent=11 // pred_fallthru
          _
        // Predicated region
        $region17: #{tpu_custom_call.1} parent=11 // pred_check
          %p182 = pneg %p94
        $region18: #{tpu_custom_call.1} parent=11 // pred_check_branch
          %184 = sbr.rel (%p182) target = $region20
        $region19: #{tpu_custom_call.1} parent=11 // pred_region
          _
        $region20: #{tpu_custom_call.1} parent=11 // pred_fallthru
          _
        // Predicated region
        $region21: #{tpu_custom_call.1} parent=11 // pred_check
          %p185 = pneg %p115
        $region22: #{tpu_custom_call.1} parent=11 // pred_check_branch
          %187 = sbr.rel (%p185) target = $region24
        $region23: #{tpu_custom_call.1} parent=11 // pred_region
          _
        $region24: #{tpu_custom_call.1} parent=11 // pred_fallthru
          _
        // Predicated region
        $region25: #{tpu_custom_call.1} parent=11 // pred_check
          %p188 = pneg %p136
        $region26: #{tpu_custom_call.1} parent=11 // pred_check_branch
          %190 = sbr.rel (%p188) target = $region28
        $region27: #{tpu_custom_call.1} parent=11 // pred_region
          _
        $region28: #{tpu_custom_call.1} parent=11 // pred_fallthru
          _
      $region12: #{tpu_custom_call.1} parent=5 // pred_fallthru
        _
      %p191 = scmp.lt.s32.totalorder %s14, 4
      // Predicated region
      $region29: #{tpu_custom_call.1} parent=5 // pred_check
        %p192 = pneg %p191
      $region30: #{tpu_custom_call.1} parent=5 // pred_check_branch
        %194 = sbr.rel (%p192) target = $region32
      $region31: #{tpu_custom_call.1} parent=5 // pred_region
        // Predicated region
        $region33: #{tpu_custom_call.1} parent=31 // pred_check
          %p195 = pneg %p46
        $region34: #{tpu_custom_call.1} parent=31 // pred_check_branch
          %197 = sbr.rel (%p195) target = $region36
        $region35: #{tpu_custom_call.1} parent=31 // pred_region
          %p198 = scmp.lt.s32.totalorder %s21, 1
          %s199 = scalar_select %p198, %s21, 1
          %s200 = smul.addr %s199, 48
          %s201 = smul.addr %s200, 8
          %s202 = scalar_lea.vmem %s0, %s201
        $region36: #{tpu_custom_call.1} parent=31 // pred_fallthru
          _
      $region32: #{tpu_custom_call.1} parent=5 // pred_fallthru
        _
      %p203 = scmp.le.s32.totalorder 1, %s14
      %p204 = scmp.lt.s32.totalorder %s14, 5
      %p205 = pnand %p203, %p204
      %p206 = pneg %p205
      // Predicated region
      $region37: #{tpu_custom_call.1} parent=5 // pred_check
        _
      $region38: #{tpu_custom_call.1} parent=5 // pred_check_branch
        %208 = sbr.rel (%p205) target = $region40
      $region39: #{tpu_custom_call.1} parent=5 // pred_region
        %s209 = ssub.s32 %s14, 1
        %p210 = scmp.lt.s32.totalorder %s23, 1
        %s211 = scalar_select %p210, %s23, 1
        %s212 = smul.addr %s211, 48
        %s213 = smul.addr %s212, 8
        %s214 = scalar_lea.vmem %s0, %s213
        %p215 = pneg %p52
        %p216 = pneg %p49
        %p217 = pneg %p73
        %p218 = pneg %p70
        %p219 = pneg %p94
        %p220 = pneg %p91
        %p221 = pneg %p115
        %p222 = pneg %p112
        %p223 = pneg %p136
        %p224 = pneg %p133
        %p225 = pneg %p164
        %p226 = pneg %p161
        %s227 = sand.u32 %s151, 1
        %s228 = scalar_lea.sflag [#allocation3], %s227
        %s229 = sand.u32 %s151, 1
        %s230 = smul.addr %s229, 128
        %s231 = scalar_lea.vmem [#allocation2], %s230
        %p232 = scmp.lt.s32.totalorder %s23, 1
        %s233 = scalar_select %p232, %s23, 1
        %s234 = smul.addr %s233, 48
        %s235 = smul.addr %s234, 8
        %s236 = scalar_lea.vmem %s0, %s235
        %s237 = smul.u32 8, %s24
        %s239 = smul.u32 %s24, 8
        %s240 = smul.u32 %s239, 16
        %s241 = scalar_lea.vmem %s236, %s240
        %v242 = vld [vmem:[%s241] sm:$0xff]
        %v243 = vld [vmem:[%s241 + $0x8] sm:$0xff]
        %v244 = vld [vmem:[%s241 + $0x10] sm:$0xff]
        %v245 = vld [vmem:[%s241 + $0x18] sm:$0xff]
        %v246 = vld [vmem:[%s241 + $0x20] sm:$0xff]
        %v247 = vld [vmem:[%s241 + $0x28] sm:$0xff]
        %v248 = vld [vmem:[%s241 + $0x30] sm:$0xff]
        %v249 = vld [vmem:[%s241 + $0x38] sm:$0xff]
        %v250 = vld [vmem:[%s241 + $0x40] sm:$0xff]
        %v251 = vld [vmem:[%s241 + $0x48] sm:$0xff]
        %v252 = vld [vmem:[%s241 + $0x50] sm:$0xff]
        %v253 = vld [vmem:[%s241 + $0x58] sm:$0xff]
        %v254 = vld [vmem:[%s241 + $0x60] sm:$0xff]
        %v255 = vld [vmem:[%s241 + $0x68] sm:$0xff]
        %v256 = vld [vmem:[%s241 + $0x70] sm:$0xff]
        %v257 = vld [vmem:[%s241 + $0x78] sm:$0xff]
        %v258 = vld [vmem:[%s241 + $0x80] sm:$0xff]
        %v259 = vld [vmem:[%s241 + $0x88] sm:$0xff]
        %v260 = vld [vmem:[%s241 + $0x90] sm:$0xff]
        %v261 = vld [vmem:[%s241 + $0x98] sm:$0xff]
        %v262 = vld [vmem:[%s241 + $0xa0] sm:$0xff]
        %v263 = vld [vmem:[%s241 + $0xa8] sm:$0xff]
        %v264 = vld [vmem:[%s241 + $0xb0] sm:$0xff]
        %v265 = vld [vmem:[%s241 + $0xb8] sm:$0xff]
        %v266 = vld [vmem:[%s241 + $0xc0] sm:$0xff]
        %v267 = vld [vmem:[%s241 + $0xc8] sm:$0xff]
        %v268 = vld [vmem:[%s241 + $0xd0] sm:$0xff]
        %v269 = vld [vmem:[%s241 + $0xd8] sm:$0xff]
        %v270 = vld [vmem:[%s241 + $0xe0] sm:$0xff]
        %v271 = vld [vmem:[%s241 + $0xe8] sm:$0xff]
        %v272 = vld [vmem:[%s241 + $0xf0] sm:$0xff]
        %v273 = vld [vmem:[%s241 + $0xf8] sm:$0xff]
        %v274 = vpack.c.bf16 %v243, %v242
        %v275 = vpack.c.bf16 %v245, %v244
        %v276 = vpack.c.bf16 %v247, %v246
        %v277 = vpack.c.bf16 %v249, %v248
        %v278 = vpack.c.bf16 %v251, %v250
        %v279 = vpack.c.bf16 %v253, %v252
        %v280 = vpack.c.bf16 %v255, %v254
        %v281 = vpack.c.bf16 %v257, %v256
        %v282 = vpack.c.bf16 %v259, %v258
        %v283 = vpack.c.bf16 %v261, %v260
        %v284 = vpack.c.bf16 %v263, %v262
        %v285 = vpack.c.bf16 %v265, %v264
        %v286 = vpack.c.bf16 %v267, %v266
        %v287 = vpack.c.bf16 %v269, %v268
        %v288 = vpack.c.bf16 %v271, %v270
        %v289 = vpack.c.bf16 %v273, %v272
        %v290 = vld [vmem:[%s1] sm:$0xf]
        %v291 = vld [vmem:[%s2] sm:$0x1]
        %v293 = vlaneseq
        %v294 = vshrl.u32 %v293, 7
        %v295 = vsub.s32 0, %v294
        %v296 = vrot.slane %v291, %v295
        %vm298 = vcmask 64512
        %v300 = vsel %vm298, %v274, 0
        %v303 = vsel %vm298, %v275, 0
        %v306 = vsel %vm298, %v276, 0
        %v309 = vsel %vm298, %v277, 0
        %v312 = vsel %vm298, %v278, 0
        %v315 = vsel %vm298, %v279, 0
        %v318 = vsel %vm298, %v280, 0
        %v321 = vsel %vm298, %v281, 0
        %v324 = vsel %vm298, %v282, 0
        %v327 = vsel %vm298, %v283, 0
        %v330 = vsel %vm298, %v284, 0
        %v333 = vsel %vm298, %v285, 0
        %v336 = vsel %vm298, %v286, 0
        %v339 = vsel %vm298, %v287, 0
        %v342 = vsel %vm298, %v288, 0
        %v345 = vsel %vm298, %v289, 0
        %vm347 = vcmask 1043456
        %v349 = vsel %vm347, %v290, 0
        %351 = vmatprep.subr.bf16.mxu0 0
        %352 = vmatpush1.bf16.msra.mxu0 %v349
        %353 = vmatprep.subr.bf16.mxu0 0
        %354 = vmatpush1.bf16.msra.mxu0 0
        %355 = vmatprep.subr.bf16.mxu0 0
        %356 = vmatpush1.bf16.msra.mxu0 0
        %357 = vmatprep.subr.bf16.mxu0 0
        %358 = vmatpush1.bf16.msra.mxu0 0
        %359 = vmatprep.subr.bf16.mxu0 0
        %360 = vmatpush1.bf16.msra.mxu0 0
        %361 = vmatprep.subr.bf16.mxu0 0
        %362 = vmatpush1.bf16.msra.mxu0 0
        %363 = vmatprep.subr.bf16.mxu0 0
        %364 = vmatpush1.bf16.msra.mxu0 0
        %365 = vmatprep.subr.bf16.mxu0 0
        %366 = vmatpush1.bf16.msra.mxu0 0
        %367 = vmatprep.subr.bf16.mxu0 0
        %368 = vmatpush1.bf16.msra.mxu0 0
        %369 = vmatprep.subr.bf16.mxu0 0
        %370 = vmatpush1.bf16.msra.mxu0 0
        %371 = vmatprep.subr.bf16.mxu0 0
        %372 = vmatpush1.bf16.msra.mxu0 0
        %373 = vmatprep.subr.bf16.mxu0 0
        %374 = vmatpush1.bf16.msra.mxu0 0
        %375 = vmatprep.subr.bf16.mxu0 0
        %376 = vmatpush1.bf16.msra.mxu0 0
        %377 = vmatprep.subr.bf16.mxu0 0
        %378 = vmatpush1.bf16.msra.mxu0 0
        %379 = vmatprep.subr.bf16.mxu0 0
        %380 = vmatpush1.bf16.msra.mxu0 0
        %381 = vmatprep.subr.bf16.mxu0 0
        %382 = vmatpush1.bf16.msra.mxu0 0
        %383 = vmatprep.mubr.bf16.mxu0 0
        %384 = vmatmul.mubr.bf16.gmra.mrb[0].mxu0 %v300
        %v385 = vpop.f32.mrb[0].mxu0
        %v386 = vadd.f32 %v296, %v385
        %v387 = vpop.f32.mrb[0].mxu0
        %v388 = vpop.f32.mrb[0].mxu0
        %v389 = vadd.f32 %v296, %v388
        %v390 = vpop.f32.mrb[0].mxu0
        %391 = vmatprep.mubr.bf16.mxu0 0
        %392 = vmatmul.mubr.bf16.gmra.mrb[0].mxu0 %v303
        %v393 = vpop.f32.mrb[0].mxu0
        %v394 = vadd.f32 %v296, %v393
        %v395 = vpop.f32.mrb[0].mxu0
        %v396 = vpop.f32.mrb[0].mxu0
        %v397 = vadd.f32 %v296, %v396
        %v398 = vpop.f32.mrb[0].mxu0
        %399 = vmatprep.mubr.bf16.mxu0 0
        %400 = vmatmul.mubr.bf16.gmra.mrb[0].mxu0 %v306
        %v401 = vpop.f32.mrb[0].mxu0
        %v402 = vadd.f32 %v296, %v401
        %v403 = vpop.f32.mrb[0].mxu0
        %v404 = vpop.f32.mrb[0].mxu0
        %v405 = vadd.f32 %v296, %v404
        %v406 = vpop.f32.mrb[0].mxu0
        %407 = vmatprep.mubr.bf16.mxu0 0
        %408 = vmatmul.mubr.bf16.gmra.mrb[0].mxu0 %v309
        %v409 = vpop.f32.mrb[0].mxu0
        %v410 = vadd.f32 %v296, %v409
        %v411 = vpop.f32.mrb[0].mxu0
        %v412 = vpop.f32.mrb[0].mxu0
        %v413 = vadd.f32 %v296, %v412
        %v414 = vpop.f32.mrb[0].mxu0
        %415 = vmatprep.mubr.bf16.mxu0 0
        %416 = vmatmul.mubr.bf16.gmra.mrb[0].mxu0 %v312
        %v417 = vpop.f32.mrb[0].mxu0
        %v418 = vadd.f32 %v296, %v417
        %v419 = vpop.f32.mrb[0].mxu0
        %v420 = vpop.f32.mrb[0].mxu0
        %v421 = vadd.f32 %v296, %v420
        %v422 = vpop.f32.mrb[0].mxu0
        %423 = vmatprep.mubr.bf16.mxu0 0
        %424 = vmatmul.mubr.bf16.gmra.mrb[0].mxu0 %v315
        %v425 = vpop.f32.mrb[0].mxu0
        %v426 = vadd.f32 %v296, %v425
        %v427 = vpop.f32.mrb[0].mxu0
        %v428 = vpop.f32.mrb[0].mxu0
        %v429 = vadd.f32 %v296, %v428
        %v430 = vpop.f32.mrb[0].mxu0
        %431 = vmatprep.mubr.bf16.mxu0 0
        %432 = vmatmul.mubr.bf16.gmra.mrb[0].mxu0 %v318
        %v433 = vpop.f32.mrb[0].mxu0
        %v434 = vadd.f32 %v296, %v433
        %v435 = vpop.f32.mrb[0].mxu0
        %v436 = vpop.f32.mrb[0].mxu0
        %v437 = vadd.f32 %v296, %v436
        %v438 = vpop.f32.mrb[0].mxu0
        %439 = vmatprep.mubr.bf16.mxu0 0
        %440 = vmatmul.mubr.bf16.gmra.mrb[0].mxu0 %v321
        %v441 = vpop.f32.mrb[0].mxu0
        %v442 = vadd.f32 %v296, %v441
        %v443 = vpop.f32.mrb[0].mxu0
        %v444 = vpop.f32.mrb[0].mxu0
        %v445 = vadd.f32 %v296, %v444
        %v446 = vpop.f32.mrb[0].mxu0
        %447 = vmatprep.mubr.bf16.mxu0 0
        %448 = vmatmul.mubr.bf16.gmra.mrb[0].mxu0 %v324
        %v449 = vpop.f32.mrb[0].mxu0
        %v450 = vadd.f32 %v296, %v449
        %v451 = vpop.f32.mrb[0].mxu0
        %v452 = vpop.f32.mrb[0].mxu0
        %v453 = vadd.f32 %v296, %v452
        %v454 = vpop.f32.mrb[0].mxu0
        %455 = vmatprep.mubr.bf16.mxu0 0
        %456 = vmatmul.mubr.bf16.gmra.mrb[0].mxu0 %v327
        %v457 = vpop.f32.mrb[0].mxu0
        %v458 = vadd.f32 %v296, %v457
        %v459 = vpop.f32.mrb[0].mxu0
        %v460 = vpop.f32.mrb[0].mxu0
        %v461 = vadd.f32 %v296, %v460
        %v462 = vpop.f32.mrb[0].mxu0
        %463 = vmatprep.mubr.bf16.mxu0 0
        %464 = vmatmul.mubr.bf16.gmra.mrb[0].mxu0 %v330
        %v465 = vpop.f32.mrb[0].mxu0
        %v466 = vadd.f32 %v296, %v465
        %v467 = vpop.f32.mrb[0].mxu0
        %v468 = vpop.f32.mrb[0].mxu0
        %v469 = vadd.f32 %v296, %v468
        %v470 = vpop.f32.mrb[0].mxu0
        %471 = vmatprep.mubr.bf16.mxu0 0
        %472 = vmatmul.mubr.bf16.gmra.mrb[0].mxu0 %v333
        %v473 = vpop.f32.mrb[0].mxu0
        %v474 = vadd.f32 %v296, %v473
        %v475 = vpop.f32.mrb[0].mxu0
        %v476 = vpop.f32.mrb[0].mxu0
        %v477 = vadd.f32 %v296, %v476
        %v478 = vpop.f32.mrb[0].mxu0
        %479 = vmatprep.mubr.bf16.mxu0 0
        %480 = vmatmul.mubr.bf16.gmra.mrb[0].mxu0 %v336
        %v481 = vpop.f32.mrb[0].mxu0
        %v482 = vadd.f32 %v296, %v481
        %v483 = vpop.f32.mrb[0].mxu0
        %v484 = vpop.f32.mrb[0].mxu0
        %v485 = vadd.f32 %v296, %v484
        %v486 = vpop.f32.mrb[0].mxu0
        %487 = vmatprep.mubr.bf16.mxu0 0
        %488 = vmatmul.mubr.bf16.gmra.mrb[0].mxu0 %v339
        %v489 = vpop.f32.mrb[0].mxu0
        %v490 = vadd.f32 %v296, %v489
        %v491 = vpop.f32.mrb[0].mxu0
        %v492 = vpop.f32.mrb[0].mxu0
        %v493 = vadd.f32 %v296, %v492
        %v494 = vpop.f32.mrb[0].mxu0
        %495 = vmatprep.mubr.bf16.mxu0 0
        %496 = vmatmul.mubr.bf16.gmra.mrb[0].mxu0 %v342
        %v497 = vpop.f32.mrb[0].mxu0
        %v498 = vadd.f32 %v296, %v497
        %v499 = vpop.f32.mrb[0].mxu0
        %v500 = vpop.f32.mrb[0].mxu0
        %v501 = vadd.f32 %v296, %v500
        %v502 = vpop.f32.mrb[0].mxu0
        %503 = vmatprep.mubr.bf16.mxu0 0
        %504 = vmatmul.mubr.bf16.gmra.mrb[0].mxu0 %v345
        %v505 = vpop.f32.mrb[0].mxu0
        %v506 = vadd.f32 %v296, %v505
        %v507 = vpop.f32.mrb[0].mxu0
        %v508 = vpop.f32.mrb[0].mxu0
        %v509 = vadd.f32 %v296, %v508
        %v510 = vpop.f32.mrb[0].mxu0
        %511 = vdwg.mxu0
        %v512 = vxor.u32 %v386, 2147483648
        %v513 = vxor.u32 %v389, 2147483648
        %v514 = vxor.u32 %v394, 2147483648
        %v515 = vxor.u32 %v397, 2147483648
        %v516 = vxor.u32 %v402, 2147483648
        %v517 = vxor.u32 %v405, 2147483648
        %v518 = vxor.u32 %v410, 2147483648
        %v519 = vxor.u32 %v413, 2147483648
        %v520 = vxor.u32 %v418, 2147483648
        %v521 = vxor.u32 %v421, 2147483648
        %v522 = vxor.u32 %v426, 2147483648
        %v523 = vxor.u32 %v429, 2147483648
        %v524 = vxor.u32 %v434, 2147483648
        %v525 = vxor.u32 %v437, 2147483648
        %v526 = vxor.u32 %v442, 2147483648
        %v527 = vxor.u32 %v445, 2147483648
        %v528 = vxor.u32 %v450, 2147483648
        %v529 = vxor.u32 %v453, 2147483648
        %v530 = vxor.u32 %v458, 2147483648
        %v531 = vxor.u32 %v461, 2147483648
        %v532 = vxor.u32 %v466, 2147483648
        %v533 = vxor.u32 %v469, 2147483648
        %v534 = vxor.u32 %v474, 2147483648
        %v535 = vxor.u32 %v477, 2147483648
        %v536 = vxor.u32 %v482, 2147483648
        %v537 = vxor.u32 %v485, 2147483648
        %v538 = vxor.u32 %v490, 2147483648
        %v539 = vxor.u32 %v493, 2147483648
        %v540 = vxor.u32 %v498, 2147483648
        %v541 = vxor.u32 %v501, 2147483648
        %v542 = vxor.u32 %v506, 2147483648
        %v543 = vxor.u32 %v509, 2147483648
        %v544 = vmul.f32 %v512, 1.442695
        %v545 = vpow.pop %v544
        %v546 = vmul.f32 %v513, 1.442695
        %v547 = vpow.pop %v546
        %v548 = vmul.f32 %v514, 1.442695
        %v549 = vpow.pop %v548
        %v550 = vmul.f32 %v515, 1.442695
        %v551 = vpow.pop %v550
        %v552 = vmul.f32 %v516, 1.442695
        %v553 = vpow.pop %v552
        %v554 = vmul.f32 %v517, 1.442695
        %v555 = vpow.pop %v554
        %v556 = vmul.f32 %v518, 1.442695
        %v557 = vpow.pop %v556
        %v558 = vmul.f32 %v519, 1.442695
        %v559 = vpow.pop %v558
        %v560 = vmul.f32 %v520, 1.442695
        %v561 = vpow.pop %v560
        %v562 = vmul.f32 %v521, 1.442695
        %v563 = vpow.pop %v562
        %v564 = vmul.f32 %v522, 1.442695
        %v565 = vpow.pop %v564
        %v566 = vmul.f32 %v523, 1.442695
        %v567 = vpow.pop %v566
        %v568 = vmul.f32 %v524, 1.442695
        %v569 = vpow.pop %v568
        %v570 = vmul.f32 %v525, 1.442695
        %v571 = vpow.pop %v570
        %v572 = vmul.f32 %v526, 1.442695
        %v573 = vpow.pop %v572
        %v574 = vmul.f32 %v527, 1.442695
        %v575 = vpow.pop %v574
        %v576 = vmul.f32 %v528, 1.442695
        %v577 = vpow.pop %v576
        %v578 = vmul.f32 %v529, 1.442695
        %v579 = vpow.pop %v578
        %v580 = vmul.f32 %v530, 1.442695
        %v581 = vpow.pop %v580
        %v582 = vmul.f32 %v531, 1.442695
        %v583 = vpow.pop %v582
        %v584 = vmul.f32 %v532, 1.442695
        %v585 = vpow.pop %v584
        %v586 = vmul.f32 %v533, 1.442695
        %v587 = vpow.pop %v586
        %v588 = vmul.f32 %v534, 1.442695
        %v589 = vpow.pop %v588
        %v590 = vmul.f32 %v535, 1.442695
        %v591 = vpow.pop %v590
        %v592 = vmul.f32 %v536, 1.442695
        %v593 = vpow.pop %v592
        %v594 = vmul.f32 %v537, 1.442695
        %v595 = vpow.pop %v594
        %v596 = vmul.f32 %v538, 1.442695
        %v597 = vpow.pop %v596
        %v598 = vmul.f32 %v539, 1.442695
        %v599 = vpow.pop %v598
        %v600 = vmul.f32 %v540, 1.442695
        %v601 = vpow.pop %v600
        %v602 = vmul.f32 %v541, 1.442695
        %v603 = vpow.pop %v602
        %v604 = vmul.f32 %v542, 1.442695
        %v605 = vpow.pop %v604
        %v606 = vmul.f32 %v543, 1.442695
        %v607 = vpow.pop %v606
        %v608 = vadd.f32 %v545, 1.0
        %v609 = vadd.f32 %v547, 1.0
        %v610 = vadd.f32 %v549, 1.0
        %v611 = vadd.f32 %v551, 1.0
        %v612 = vadd.f32 %v553, 1.0
        %v613 = vadd.f32 %v555, 1.0
        %v614 = vadd.f32 %v557, 1.0
        %v615 = vadd.f32 %v559, 1.0
        %v616 = vadd.f32 %v561, 1.0
        %v617 = vadd.f32 %v563, 1.0
        %v618 = vadd.f32 %v565, 1.0
        %v619 = vadd.f32 %v567, 1.0
        %v620 = vadd.f32 %v569, 1.0
        %v621 = vadd.f32 %v571, 1.0
        %v622 = vadd.f32 %v573, 1.0
        %v623 = vadd.f32 %v575, 1.0
        %v624 = vadd.f32 %v577, 1.0
        %v625 = vadd.f32 %v579, 1.0
        %v626 = vadd.f32 %v581, 1.0
        %v627 = vadd.f32 %v583, 1.0
        %v628 = vadd.f32 %v585, 1.0
        %v629 = vadd.f32 %v587, 1.0
        %v630 = vadd.f32 %v589, 1.0
        %v631 = vadd.f32 %v591, 1.0
        %v632 = vadd.f32 %v593, 1.0
        %v633 = vadd.f32 %v595, 1.0
        %v634 = vadd.f32 %v597, 1.0
        %v635 = vadd.f32 %v599, 1.0
        %v636 = vadd.f32 %v601, 1.0
        %v637 = vadd.f32 %v603, 1.0
        %v638 = vadd.f32 %v605, 1.0
        %v639 = vadd.f32 %v607, 1.0
        %v640 = vrcp.pop %v608
        %v641 = vmul.f32 1.0, %v640
        %v642 = vrcp.pop %v609
        %v643 = vmul.f32 1.0, %v642
        %v644 = vrcp.pop %v610
        %v645 = vmul.f32 1.0, %v644
        %v646 = vrcp.pop %v611
        %v647 = vmul.f32 1.0, %v646
        %v648 = vrcp.pop %v612
        %v649 = vmul.f32 1.0, %v648
        %v650 = vrcp.pop %v613
        %v651 = vmul.f32 1.0, %v650
        %v652 = vrcp.pop %v614
        %v653 = vmul.f32 1.0, %v652
        %v654 = vrcp.pop %v615
        %v655 = vmul.f32 1.0, %v654
        %v656 = vrcp.pop %v616
        %v657 = vmul.f32 1.0, %v656
        %v658 = vrcp.pop %v617
        %v659 = vmul.f32 1.0, %v658
        %v660 = vrcp.pop %v618
        %v661 = vmul.f32 1.0, %v660
        %v662 = vrcp.pop %v619
        %v663 = vmul.f32 1.0, %v662
        %v664 = vrcp.pop %v620
        %v665 = vmul.f32 1.0, %v664
        %v666 = vrcp.pop %v621
        %v667 = vmul.f32 1.0, %v666
        %v668 = vrcp.pop %v622
        %v669 = vmul.f32 1.0, %v668
        %v670 = vrcp.pop %v623
        %v671 = vmul.f32 1.0, %v670
        %v672 = vrcp.pop %v624
        %v673 = vmul.f32 1.0, %v672
        %v674 = vrcp.pop %v625
        %v675 = vmul.f32 1.0, %v674
        %v676 = vrcp.pop %v626
        %v677 = vmul.f32 1.0, %v676
        %v678 = vrcp.pop %v627
        %v679 = vmul.f32 1.0, %v678
        %v680 = vrcp.pop %v628
        %v681 = vmul.f32 1.0, %v680
        %v682 = vrcp.pop %v629
        %v683 = vmul.f32 1.0, %v682
        %v684 = vrcp.pop %v630
        %v685 = vmul.f32 1.0, %v684
        %v686 = vrcp.pop %v631
        %v687 = vmul.f32 1.0, %v686
        %v688 = vrcp.pop %v632
        %v689 = vmul.f32 1.0, %v688
        %v690 = vrcp.pop %v633
        %v691 = vmul.f32 1.0, %v690
        %v692 = vrcp.pop %v634
        %v693 = vmul.f32 1.0, %v692
        %v694 = vrcp.pop %v635
        %v695 = vmul.f32 1.0, %v694
        %v696 = vrcp.pop %v636
        %v697 = vmul.f32 1.0, %v696
        %v698 = vrcp.pop %v637
        %v699 = vmul.f32 1.0, %v698
        %v700 = vrcp.pop %v638
        %v701 = vmul.f32 1.0, %v700
        %v702 = vrcp.pop %v639
        %v703 = vmul.f32 1.0, %v702
        %v704 = vmul.f32 %v386, %v641
        %v705 = vmul.f32 %v389, %v643
        %v706 = vmul.f32 %v394, %v645
        %v707 = vmul.f32 %v397, %v647
        %v708 = vmul.f32 %v402, %v649
        %v709 = vmul.f32 %v405, %v651
        %v710 = vmul.f32 %v410, %v653
        %v711 = vmul.f32 %v413, %v655
        %v712 = vmul.f32 %v418, %v657
        %v713 = vmul.f32 %v421, %v659
        %v714 = vmul.f32 %v426, %v661
        %v715 = vmul.f32 %v429, %v663
        %v716 = vmul.f32 %v434, %v665
        %v717 = vmul.f32 %v437, %v667
        %v718 = vmul.f32 %v442, %v669
        %v719 = vmul.f32 %v445, %v671
        %v720 = vmul.f32 %v450, %v673
        %v721 = vmul.f32 %v453, %v675
        %v722 = vmul.f32 %v458, %v677
        %v723 = vmul.f32 %v461, %v679
        %v724 = vmul.f32 %v466, %v681
        %v725 = vmul.f32 %v469, %v683
        %v726 = vmul.f32 %v474, %v685
        %v727 = vmul.f32 %v477, %v687
        %v728 = vmul.f32 %v482, %v689
        %v729 = vmul.f32 %v485, %v691
        %v730 = vmul.f32 %v490, %v693
        %v731 = vmul.f32 %v493, %v695
        %v732 = vmul.f32 %v498, %v697
        %v733 = vmul.f32 %v501, %v699
        %v734 = vmul.f32 %v506, %v701
        %v735 = vmul.f32 %v509, %v703
        %s736 = ssub.s32 %s239, 4
        %v737 = vstv %s736
        %v738 = vadd.s32 %v737, 1
        %v739 = vadd.s32 %v737, 2
        %v740 = vadd.s32 %v737, 3
        %v741 = vadd.s32 %v737, 4
        %v742 = vadd.s32 %v737, 5
        %v743 = vadd.s32 %v737, 6
        %v744 = vadd.s32 %v737, 7
        %v745 = vadd.s32 %v737, 8
        %v746 = vadd.s32 %v737, 9
        %v747 = vadd.s32 %v737, 10
        %v748 = vadd.s32 %v737, 11
        %v749 = vadd.s32 %v737, 12
        %v750 = vadd.s32 %v737, 13
        %v751 = vadd.s32 %v737, 14
        %v752 = vadd.s32 %v737, 15
        %vm753 = vcmp.ge.s32.totalorder %v737, 0
        %vm754 = vcmp.ge.s32.totalorder %v738, 0
        %vm755 = vcmp.ge.s32.totalorder %v739, 0
        %vm756 = vcmp.ge.s32.totalorder %v740, 0
        %vm757 = vcmp.ge.s32.totalorder %v741, 0
        %vm758 = vcmp.ge.s32.totalorder %v742, 0
        %vm759 = vcmp.ge.s32.totalorder %v743, 0
        %vm760 = vcmp.ge.s32.totalorder %v744, 0
        %vm761 = vcmp.ge.s32.totalorder %v745, 0
        %vm762 = vcmp.ge.s32.totalorder %v746, 0
        %vm763 = vcmp.ge.s32.totalorder %v747, 0
        %vm764 = vcmp.ge.s32.totalorder %v748, 0
        %vm765 = vcmp.ge.s32.totalorder %v749, 0
        %vm766 = vcmp.ge.s32.totalorder %v750, 0
        %vm767 = vcmp.ge.s32.totalorder %v751, 0
        %vm768 = vcmp.ge.s32.totalorder %v752, 0
        %vm769 = vcmp.lt.s32.totalorder %v737, 16
        %vm770 = vcmp.lt.s32.totalorder %v738, 16
        %vm771 = vcmp.lt.s32.totalorder %v739, 16
        %vm772 = vcmp.lt.s32.totalorder %v740, 16
        %vm773 = vcmp.lt.s32.totalorder %v741, 16
        %vm774 = vcmp.lt.s32.totalorder %v742, 16
        %vm775 = vcmp.lt.s32.totalorder %v743, 16
        %vm776 = vcmp.lt.s32.totalorder %v744, 16
        %vm777 = vcmp.lt.s32.totalorder %v745, 16
        %vm778 = vcmp.lt.s32.totalorder %v746, 16
        %vm779 = vcmp.lt.s32.totalorder %v747, 16
        %vm780 = vcmp.lt.s32.totalorder %v748, 16
        %vm781 = vcmp.lt.s32.totalorder %v749, 16
        %vm782 = vcmp.lt.s32.totalorder %v750, 16
        %vm783 = vcmp.lt.s32.totalorder %v751, 16
        %vm784 = vcmp.lt.s32.totalorder %v752, 16
        %vm785 = vmand %vm753, %vm769
        %vm786 = vmand %vm754, %vm770
        %vm787 = vmand %vm755, %vm771
        %vm788 = vmand %vm756, %vm772
        %vm789 = vmand %vm757, %vm773
        %vm790 = vmand %vm758, %vm774
        %vm791 = vmand %vm759, %vm775
        %vm792 = vmand %vm760, %vm776
        %vm793 = vmand %vm761, %vm777
        %vm794 = vmand %vm762, %vm778
        %vm795 = vmand %vm763, %vm779
        %vm796 = vmand %vm764, %vm780
        %vm797 = vmand %vm765, %vm781
        %vm798 = vmand %vm766, %vm782
        %vm799 = vmand %vm767, %vm783
        %vm800 = vmand %vm768, %vm784
        %v801 = vsel %vm785, %v704, -1e+30
        %v802 = vsel %vm785, %v705, -1e+30
        %v803 = vsel %vm786, %v706, -1e+30
        %v804 = vsel %vm786, %v707, -1e+30
        %v805 = vsel %vm787, %v708, -1e+30
        %v806 = vsel %vm787, %v709, -1e+30
        %v807 = vsel %vm788, %v710, -1e+30
        %v808 = vsel %vm788, %v711, -1e+30
        %v809 = vsel %vm789, %v712, -1e+30
        %v810 = vsel %vm789, %v713, -1e+30
        %v811 = vsel %vm790, %v714, -1e+30
        %v812 = vsel %vm790, %v715, -1e+30
        %v813 = vsel %vm791, %v716, -1e+30
        %v814 = vsel %vm791, %v717, -1e+30
        %v815 = vsel %vm792, %v718, -1e+30
        %v816 = vsel %vm792, %v719, -1e+30
        %v817 = vsel %vm793, %v720, -1e+30
        %v818 = vsel %vm793, %v721, -1e+30
        %v819 = vsel %vm794, %v722, -1e+30
        %v820 = vsel %vm794, %v723, -1e+30
        %v821 = vsel %vm795, %v724, -1e+30
        %v822 = vsel %vm795, %v725, -1e+30
        %v823 = vsel %vm796, %v726, -1e+30
        %v824 = vsel %vm796, %v727, -1e+30
        %v825 = vsel %vm797, %v728, -1e+30
        %v826 = vsel %vm797, %v729, -1e+30
        %v827 = vsel %vm798, %v730, -1e+30
        %v828 = vsel %vm798, %v731, -1e+30
        %v829 = vsel %vm799, %v732, -1e+30
        %v830 = vsel %vm799, %v733, -1e+30
        %v831 = vsel %vm800, %v734, -1e+30
        %v832 = vsel %vm800, %v735, -1e+30
        %v865 = vrot.slane %v801, 4
        %v866 = vrot.slane %v802, 4
        %v867 = vsel %vm347, %v865, %v866
        %v868 = vrot.slane %v803, 4
        %v869 = vrot.slane %v804, 4
        %v870 = vsel %vm347, %v868, %v869
        %v871 = vrot.slane %v805, 4
        %v872 = vrot.slane %v806, 4
        %v873 = vsel %vm347, %v871, %v872
        %v874 = vrot.slane %v807, 4
        %v875 = vrot.slane %v808, 4
        %v876 = vsel %vm347, %v874, %v875
        %v877 = vrot.slane %v809, 4
        %v878 = vrot.slane %v810, 4
        %v879 = vsel %vm347, %v877, %v878
        %v880 = vrot.slane %v811, 4
        %v881 = vrot.slane %v812, 4
        %v882 = vsel %vm347, %v880, %v881
        %v883 = vrot.slane %v813, 4
        %v884 = vrot.slane %v814, 4
        %v885 = vsel %vm347, %v883, %v884
        %v886 = vrot.slane %v815, 4
        %v887 = vrot.slane %v816, 4
        %v888 = vsel %vm347, %v886, %v887
        %v889 = vrot.slane %v817, 4
        %v890 = vrot.slane %v818, 4
        %v891 = vsel %vm347, %v889, %v890
        %v892 = vrot.slane %v819, 4
        %v893 = vrot.slane %v820, 4
        %v894 = vsel %vm347, %v892, %v893
        %v895 = vrot.slane %v821, 4
        %v896 = vrot.slane %v822, 4
        %v897 = vsel %vm347, %v895, %v896
        %v898 = vrot.slane %v823, 4
        %v899 = vrot.slane %v824, 4
        %v900 = vsel %vm347, %v898, %v899
        %v901 = vrot.slane %v825, 4
        %v902 = vrot.slane %v826, 4
        %v903 = vsel %vm347, %v901, %v902
        %v904 = vrot.slane %v827, 4
        %v905 = vrot.slane %v828, 4
        %v906 = vsel %vm347, %v904, %v905
        %v907 = vrot.slane %v829, 4
        %v908 = vrot.slane %v830, 4
        %v909 = vsel %vm347, %v907, %v908
        %v910 = vrot.slane %v831, 4
        %v911 = vrot.slane %v832, 4
        %v912 = vsel %vm347, %v910, %v911
        %v961 = vsel %vm347, -1e+30, %v865
        %v962 = vsel %vm347, -1e+30, %v868
        %v963 = vsel %vm347, -1e+30, %v871
        %v964 = vsel %vm347, -1e+30, %v874
        %v965 = vsel %vm347, -1e+30, %v877
        %v966 = vsel %vm347, -1e+30, %v880
        %v967 = vsel %vm347, -1e+30, %v883
        %v968 = vsel %vm347, -1e+30, %v886
        %v969 = vsel %vm347, -1e+30, %v889
        %v970 = vsel %vm347, -1e+30, %v892
        %v971 = vsel %vm347, -1e+30, %v895
        %v972 = vsel %vm347, -1e+30, %v898
        %v973 = vsel %vm347, -1e+30, %v901
        %v974 = vsel %vm347, -1e+30, %v904
        %v975 = vsel %vm347, -1e+30, %v907
        %v976 = vsel %vm347, -1e+30, %v910
        %v977 = vsel %vm347, %v866, -1e+30
        %v978 = vsel %vm347, %v869, -1e+30
        %v979 = vsel %vm347, %v872, -1e+30
        %v980 = vsel %vm347, %v875, -1e+30
        %v981 = vsel %vm347, %v878, -1e+30
        %v982 = vsel %vm347, %v881, -1e+30
        %v983 = vsel %vm347, %v884, -1e+30
        %v984 = vsel %vm347, %v887, -1e+30
        %v985 = vsel %vm347, %v890, -1e+30
        %v986 = vsel %vm347, %v893, -1e+30
        %v987 = vsel %vm347, %v896, -1e+30
        %v988 = vsel %vm347, %v899, -1e+30
        %v989 = vsel %vm347, %v902, -1e+30
        %v990 = vsel %vm347, %v905, -1e+30
        %v991 = vsel %vm347, %v908, -1e+30
        %v992 = vsel %vm347, %v911, -1e+30
        %vm1025 = vcmask 1045504
        %v1026 = vrot.slane %v961, 2
        %v1027 = vrot.slane %v867, 2
        %v1028 = vsel %vm1025, %v1026, %v1027
        %v1029 = vrot.slane %v977, 2
        %v1030 = vsel %vm1025, %v1027, %v1029
        %v1031 = vrot.slane %v962, 2
        %v1032 = vrot.slane %v870, 2
        %v1033 = vsel %vm1025, %v1031, %v1032
        %v1034 = vrot.slane %v978, 2
        %v1035 = vsel %vm1025, %v1032, %v1034
        %v1036 = vrot.slane %v963, 2
        %v1037 = vrot.slane %v873, 2
        %v1038 = vsel %vm1025, %v1036, %v1037
        %v1039 = vrot.slane %v979, 2
        %v1040 = vsel %vm1025, %v1037, %v1039
        %v1041 = vrot.slane %v964, 2
        %v1042 = vrot.slane %v876, 2
        %v1043 = vsel %vm1025, %v1041, %v1042
        %v1044 = vrot.slane %v980, 2
        %v1045 = vsel %vm1025, %v1042, %v1044
        %v1046 = vrot.slane %v965, 2
        %v1047 = vrot.slane %v879, 2
        %v1048 = vsel %vm1025, %v1046, %v1047
        %v1049 = vrot.slane %v981, 2
        %v1050 = vsel %vm1025, %v1047, %v1049
        %v1051 = vrot.slane %v966, 2
        %v1052 = vrot.slane %v882, 2
        %v1053 = vsel %vm1025, %v1051, %v1052
        %v1054 = vrot.slane %v982, 2
        %v1055 = vsel %vm1025, %v1052, %v1054
        %v1056 = vrot.slane %v967, 2
        %v1057 = vrot.slane %v885, 2
        %v1058 = vsel %vm1025, %v1056, %v1057
        %v1059 = vrot.slane %v983, 2
        %v1060 = vsel %vm1025, %v1057, %v1059
        %v1061 = vrot.slane %v968, 2
        %v1062 = vrot.slane %v888, 2
        %v1063 = vsel %vm1025, %v1061, %v1062
        %v1064 = vrot.slane %v984, 2
        %v1065 = vsel %vm1025, %v1062, %v1064
        %v1066 = vrot.slane %v969, 2
        %v1067 = vrot.slane %v891, 2
        %v1068 = vsel %vm1025, %v1066, %v1067
        %v1069 = vrot.slane %v985, 2
        %v1070 = vsel %vm1025, %v1067, %v1069
        %v1071 = vrot.slane %v970, 2
        %v1072 = vrot.slane %v894, 2
        %v1073 = vsel %vm1025, %v1071, %v1072
        %v1074 = vrot.slane %v986, 2
        %v1075 = vsel %vm1025, %v1072, %v1074
        %v1076 = vrot.slane %v971, 2
        %v1077 = vrot.slane %v897, 2
        %v1078 = vsel %vm1025, %v1076, %v1077
        %v1079 = vrot.slane %v987, 2
        %v1080 = vsel %vm1025, %v1077, %v1079
        %v1081 = vrot.slane %v972, 2
        %v1082 = vrot.slane %v900, 2
        %v1083 = vsel %vm1025, %v1081, %v1082
        %v1084 = vrot.slane %v988, 2
        %v1085 = vsel %vm1025, %v1082, %v1084
        %v1086 = vrot.slane %v973, 2
        %v1087 = vrot.slane %v903, 2
        %v1088 = vsel %vm1025, %v1086, %v1087
        %v1089 = vrot.slane %v989, 2
        %v1090 = vsel %vm1025, %v1087, %v1089
        %v1091 = vrot.slane %v974, 2
        %v1092 = vrot.slane %v906, 2
        %v1093 = vsel %vm1025, %v1091, %v1092
        %v1094 = vrot.slane %v990, 2
        %v1095 = vsel %vm1025, %v1092, %v1094
        %v1096 = vrot.slane %v975, 2
        %v1097 = vrot.slane %v909, 2
        %v1098 = vsel %vm1025, %v1096, %v1097
        %v1099 = vrot.slane %v991, 2
        %v1100 = vsel %vm1025, %v1097, %v1099
        %v1101 = vrot.slane %v976, 2
        %v1102 = vrot.slane %v912, 2
        %v1103 = vsel %vm1025, %v1101, %v1102
        %v1104 = vrot.slane %v992, 2
        %v1105 = vsel %vm1025, %v1102, %v1104
        %v1154 = vmax.f32 %v961, %v1028
        %v1155 = vmax.f32 %v867, %v1030
        %v1156 = vmax.f32 %v977, %v1029
        %v1157 = vmax.f32 %v962, %v1033
        %v1158 = vmax.f32 %v870, %v1035
        %v1159 = vmax.f32 %v978, %v1034
        %v1160 = vmax.f32 %v963, %v1038
        %v1161 = vmax.f32 %v873, %v1040
        %v1162 = vmax.f32 %v979, %v1039
        %v1163 = vmax.f32 %v964, %v1043
        %v1164 = vmax.f32 %v876, %v1045
        %v1165 = vmax.f32 %v980, %v1044
        %v1166 = vmax.f32 %v965, %v1048
        %v1167 = vmax.f32 %v879, %v1050
        %v1168 = vmax.f32 %v981, %v1049
        %v1169 = vmax.f32 %v966, %v1053
        %v1170 = vmax.f32 %v882, %v1055
        %v1171 = vmax.f32 %v982, %v1054
        %v1172 = vmax.f32 %v967, %v1058
        %v1173 = vmax.f32 %v885, %v1060
        %v1174 = vmax.f32 %v983, %v1059
        %v1175 = vmax.f32 %v968, %v1063
        %v1176 = vmax.f32 %v888, %v1065
        %v1177 = vmax.f32 %v984, %v1064
        %v1178 = vmax.f32 %v969, %v1068
        %v1179 = vmax.f32 %v891, %v1070
        %v1180 = vmax.f32 %v985, %v1069
        %v1181 = vmax.f32 %v970, %v1073
        %v1182 = vmax.f32 %v894, %v1075
        %v1183 = vmax.f32 %v986, %v1074
        %v1184 = vmax.f32 %v971, %v1078
        %v1185 = vmax.f32 %v897, %v1080
        %v1186 = vmax.f32 %v987, %v1079
        %v1187 = vmax.f32 %v972, %v1083
        %v1188 = vmax.f32 %v900, %v1085
        %v1189 = vmax.f32 %v988, %v1084
        %v1190 = vmax.f32 %v973, %v1088
        %v1191 = vmax.f32 %v903, %v1090
        %v1192 = vmax.f32 %v989, %v1089
        %v1193 = vmax.f32 %v974, %v1093
        %v1194 = vmax.f32 %v906, %v1095
        %v1195 = vmax.f32 %v990, %v1094
        %v1196 = vmax.f32 %v975, %v1098
        %v1197 = vmax.f32 %v909, %v1100
        %v1198 = vmax.f32 %v991, %v1099
        %v1199 = vmax.f32 %v976, %v1103
        %v1200 = vmax.f32 %v912, %v1105
        %v1201 = vmax.f32 %v992, %v1104
        %vm1250 = vcmask 1044480
        %v1251 = vrot.slane %v1154, 3
        %v1252 = vrot.slane %v1155, 3
        %v1253 = vsel %vm1250, %v1251, %v1252
        %v1254 = vrot.slane %v1156, 3
        %v1255 = vsel %vm1250, %v1252, %v1254
        %v1256 = vrot.slane %v1157, 3
        %v1257 = vrot.slane %v1158, 3
        %v1258 = vsel %vm1250, %v1256, %v1257
        %v1259 = vrot.slane %v1159, 3
        %v1260 = vsel %vm1250, %v1257, %v1259
        %v1261 = vrot.slane %v1160, 3
        %v1262 = vrot.slane %v1161, 3
        %v1263 = vsel %vm1250, %v1261, %v1262
        %v1264 = vrot.slane %v1162, 3
        %v1265 = vsel %vm1250, %v1262, %v1264
        %v1266 = vrot.slane %v1163, 3
        %v1267 = vrot.slane %v1164, 3
        %v1268 = vsel %vm1250, %v1266, %v1267
        %v1269 = vrot.slane %v1165, 3
        %v1270 = vsel %vm1250, %v1267, %v1269
        %v1271 = vrot.slane %v1166, 3
        %v1272 = vrot.slane %v1167, 3
        %v1273 = vsel %vm1250, %v1271, %v1272
        %v1274 = vrot.slane %v1168, 3
        %v1275 = vsel %vm1250, %v1272, %v1274
        %v1276 = vrot.slane %v1169, 3
        %v1277 = vrot.slane %v1170, 3
        %v1278 = vsel %vm1250, %v1276, %v1277
        %v1279 = vrot.slane %v1171, 3
        %v1280 = vsel %vm1250, %v1277, %v1279
        %v1281 = vrot.slane %v1172, 3
        %v1282 = vrot.slane %v1173, 3
        %v1283 = vsel %vm1250, %v1281, %v1282
        %v1284 = vrot.slane %v1174, 3
        %v1285 = vsel %vm1250, %v1282, %v1284
        %v1286 = vrot.slane %v1175, 3
        %v1287 = vrot.slane %v1176, 3
        %v1288 = vsel %vm1250, %v1286, %v1287
        %v1289 = vrot.slane %v1177, 3
        %v1290 = vsel %vm1250, %v1287, %v1289
        %v1291 = vrot.slane %v1178, 3
        %v1292 = vrot.slane %v1179, 3
        %v1293 = vsel %vm1250, %v1291, %v1292
        %v1294 = vrot.slane %v1180, 3
        %v1295 = vsel %vm1250, %v1292, %v1294
        %v1296 = vrot.slane %v1181, 3
        %v1297 = vrot.slane %v1182, 3
        %v1298 = vsel %vm1250, %v1296, %v1297
        %v1299 = vrot.slane %v1183, 3
        %v1300 = vsel %vm1250, %v1297, %v1299
        %v1301 = vrot.slane %v1184, 3
        %v1302 = vrot.slane %v1185, 3
        %v1303 = vsel %vm1250, %v1301, %v1302
        %v1304 = vrot.slane %v1186, 3
        %v1305 = vsel %vm1250, %v1302, %v1304
        %v1306 = vrot.slane %v1187, 3
        %v1307 = vrot.slane %v1188, 3
        %v1308 = vsel %vm1250, %v1306, %v1307
        %v1309 = vrot.slane %v1189, 3
        %v1310 = vsel %vm1250, %v1307, %v1309
        %v1311 = vrot.slane %v1190, 3
        %v1312 = vrot.slane %v1191, 3
        %v1313 = vsel %vm1250, %v1311, %v1312
        %v1314 = vrot.slane %v1192, 3
        %v1315 = vsel %vm1250, %v1312, %v1314
        %v1316 = vrot.slane %v1193, 3
        %v1317 = vrot.slane %v1194, 3
        %v1318 = vsel %vm1250, %v1316, %v1317
        %v1319 = vrot.slane %v1195, 3
        %v1320 = vsel %vm1250, %v1317, %v1319
        %v1321 = vrot.slane %v1196, 3
        %v1322 = vrot.slane %v1197, 3
        %v1323 = vsel %vm1250, %v1321, %v1322
        %v1324 = vrot.slane %v1198, 3
        %v1325 = vsel %vm1250, %v1322, %v1324
        %v1326 = vrot.slane %v1199, 3
        %v1327 = vrot.slane %v1200, 3
        %v1328 = vsel %vm1250, %v1326, %v1327
        %v1329 = vrot.slane %v1201, 3
        %v1330 = vsel %vm1250, %v1327, %v1329
        %v1363 = vmax.f32 %v801, %v1253
        %v1364 = vmax.f32 %v802, %v1255
        %v1365 = vmax.f32 %v803, %v1258
        %v1366 = vmax.f32 %v804, %v1260
        %v1367 = vmax.f32 %v805, %v1263
        %v1368 = vmax.f32 %v806, %v1265
        %v1369 = vmax.f32 %v807, %v1268
        %v1370 = vmax.f32 %v808, %v1270
        %v1371 = vmax.f32 %v809, %v1273
        %v1372 = vmax.f32 %v810, %v1275
        %v1373 = vmax.f32 %v811, %v1278
        %v1374 = vmax.f32 %v812, %v1280
        %v1375 = vmax.f32 %v813, %v1283
        %v1376 = vmax.f32 %v814, %v1285
        %v1377 = vmax.f32 %v815, %v1288
        %v1378 = vmax.f32 %v816, %v1290
        %v1379 = vmax.f32 %v817, %v1293
        %v1380 = vmax.f32 %v818, %v1295
        %v1381 = vmax.f32 %v819, %v1298
        %v1382 = vmax.f32 %v820, %v1300
        %v1383 = vmax.f32 %v821, %v1303
        %v1384 = vmax.f32 %v822, %v1305
        %v1385 = vmax.f32 %v823, %v1308
        %v1386 = vmax.f32 %v824, %v1310
        %v1387 = vmax.f32 %v825, %v1313
        %v1388 = vmax.f32 %v826, %v1315
        %v1389 = vmax.f32 %v827, %v1318
        %v1390 = vmax.f32 %v828, %v1320
        %v1391 = vmax.f32 %v829, %v1323
        %v1392 = vmax.f32 %v830, %v1325
        %v1393 = vmax.f32 %v831, %v1328
        %v1394 = vmax.f32 %v832, %v1330
        %v1395 = vrot.slane %v961, 4
        %v1396 = vrot.slane %v867, 4
        %v1397 = vsel %vm347, %v1395, %v1396
        %v1398 = vrot.slane %v977, 4
        %v1399 = vsel %vm347, %v1396, %v1398
        %v1400 = vrot.slane %v962, 4
        %v1401 = vrot.slane %v870, 4
        %v1402 = vsel %vm347, %v1400, %v1401
        %v1403 = vrot.slane %v978, 4
        %v1404 = vsel %vm347, %v1401, %v1403
        %v1405 = vrot.slane %v963, 4
        %v1406 = vrot.slane %v873, 4
        %v1407 = vsel %vm347, %v1405, %v1406
        %v1408 = vrot.slane %v979, 4
        %v1409 = vsel %vm347, %v1406, %v1408
        %v1410 = vrot.slane %v964, 4
        %v1411 = vrot.slane %v876, 4
        %v1412 = vsel %vm347, %v1410, %v1411
        %v1413 = vrot.slane %v980, 4
        %v1414 = vsel %vm347, %v1411, %v1413
        %v1415 = vrot.slane %v965, 4
        %v1416 = vrot.slane %v879, 4
        %v1417 = vsel %vm347, %v1415, %v1416
        %v1418 = vrot.slane %v981, 4
        %v1419 = vsel %vm347, %v1416, %v1418
        %v1420 = vrot.slane %v966, 4
        %v1421 = vrot.slane %v882, 4
        %v1422 = vsel %vm347, %v1420, %v1421
        %v1423 = vrot.slane %v982, 4
        %v1424 = vsel %vm347, %v1421, %v1423
        %v1425 = vrot.slane %v967, 4
        %v1426 = vrot.slane %v885, 4
        %v1427 = vsel %vm347, %v1425, %v1426
        %v1428 = vrot.slane %v983, 4
        %v1429 = vsel %vm347, %v1426, %v1428
        %v1430 = vrot.slane %v968, 4
        %v1431 = vrot.slane %v888, 4
        %v1432 = vsel %vm347, %v1430, %v1431
        %v1433 = vrot.slane %v984, 4
        %v1434 = vsel %vm347, %v1431, %v1433
        %v1435 = vrot.slane %v969, 4
        %v1436 = vrot.slane %v891, 4
        %v1437 = vsel %vm347, %v1435, %v1436
        %v1438 = vrot.slane %v985, 4
        %v1439 = vsel %vm347, %v1436, %v1438
        %v1440 = vrot.slane %v970, 4
        %v1441 = vrot.slane %v894, 4
        %v1442 = vsel %vm347, %v1440, %v1441
        %v1443 = vrot.slane %v986, 4
        %v1444 = vsel %vm347, %v1441, %v1443
        %v1445 = vrot.slane %v971, 4
        %v1446 = vrot.slane %v897, 4
        %v1447 = vsel %vm347, %v1445, %v1446
        %v1448 = vrot.slane %v987, 4
        %v1449 = vsel %vm347, %v1446, %v1448
        %v1450 = vrot.slane %v972, 4
        %v1451 = vrot.slane %v900, 4
        %v1452 = vsel %vm347, %v1450, %v1451
        %v1453 = vrot.slane %v988, 4
        %v1454 = vsel %vm347, %v1451, %v1453
        %v1455 = vrot.slane %v973, 4
        %v1456 = vrot.slane %v903, 4
        %v1457 = vsel %vm347, %v1455, %v1456
        %v1458 = vrot.slane %v989, 4
        %v1459 = vsel %vm347, %v1456, %v1458
        %v1460 = vrot.slane %v974, 4
        %v1461 = vrot.slane %v906, 4
        %v1462 = vsel %vm347, %v1460, %v1461
        %v1463 = vrot.slane %v990, 4
        %v1464 = vsel %vm347, %v1461, %v1463
        %v1465 = vrot.slane %v975, 4
        %v1466 = vrot.slane %v909, 4
        %v1467 = vsel %vm347, %v1465, %v1466
        %v1468 = vrot.slane %v991, 4
        %v1469 = vsel %vm347, %v1466, %v1468
        %v1470 = vrot.slane %v976, 4
        %v1471 = vrot.slane %v912, 4
        %v1472 = vsel %vm347, %v1470, %v1471
        %v1473 = vrot.slane %v992, 4
        %v1474 = vsel %vm347, %v1471, %v1473
        %v1523 = vmax.f32 %v961, %v1397
        %v1524 = vmax.f32 %v867, %v1399
        %v1525 = vmax.f32 %v977, %v1398
        %v1526 = vmax.f32 %v962, %v1402
        %v1527 = vmax.f32 %v870, %v1404
        %v1528 = vmax.f32 %v978, %v1403
        %v1529 = vmax.f32 %v963, %v1407
        %v1530 = vmax.f32 %v873, %v1409
        %v1531 = vmax.f32 %v979, %v1408
        %v1532 = vmax.f32 %v964, %v1412
        %v1533 = vmax.f32 %v876, %v1414
        %v1534 = vmax.f32 %v980, %v1413
        %v1535 = vmax.f32 %v965, %v1417
        %v1536 = vmax.f32 %v879, %v1419
        %v1537 = vmax.f32 %v981, %v1418
        %v1538 = vmax.f32 %v966, %v1422
        %v1539 = vmax.f32 %v882, %v1424
        %v1540 = vmax.f32 %v982, %v1423
        %v1541 = vmax.f32 %v967, %v1427
        %v1542 = vmax.f32 %v885, %v1429
        %v1543 = vmax.f32 %v983, %v1428
        %v1544 = vmax.f32 %v968, %v1432
        %v1545 = vmax.f32 %v888, %v1434
        %v1546 = vmax.f32 %v984, %v1433
        %v1547 = vmax.f32 %v969, %v1437
        %v1548 = vmax.f32 %v891, %v1439
        %v1549 = vmax.f32 %v985, %v1438
        %v1550 = vmax.f32 %v970, %v1442
        %v1551 = vmax.f32 %v894, %v1444
        %v1552 = vmax.f32 %v986, %v1443
        %v1553 = vmax.f32 %v971, %v1447
        %v1554 = vmax.f32 %v897, %v1449
        %v1555 = vmax.f32 %v987, %v1448
        %v1556 = vmax.f32 %v972, %v1452
        %v1557 = vmax.f32 %v900, %v1454
        %v1558 = vmax.f32 %v988, %v1453
        %v1559 = vmax.f32 %v973, %v1457
        %v1560 = vmax.f32 %v903, %v1459
        %v1561 = vmax.f32 %v989, %v1458
        %v1562 = vmax.f32 %v974, %v1462
        %v1563 = vmax.f32 %v906, %v1464
        %v1564 = vmax.f32 %v990, %v1463
        %v1565 = vmax.f32 %v975, %v1467
        %v1566 = vmax.f32 %v909, %v1469
        %v1567 = vmax.f32 %v991, %v1468
        %v1568 = vmax.f32 %v976, %v1472
        %v1569 = vmax.f32 %v912, %v1474
        %v1570 = vmax.f32 %v992, %v1473
        %v1619 = vrot.slane %v1523, 2
        %v1620 = vrot.slane %v1524, 2
        %v1621 = vsel %vm1025, %v1619, %v1620
        %v1622 = vrot.slane %v1525, 2
        %v1623 = vsel %vm1025, %v1620, %v1622
        %v1624 = vrot.slane %v1526, 2
        %v1625 = vrot.slane %v1527, 2
        %v1626 = vsel %vm1025, %v1624, %v1625
        %v1627 = vrot.slane %v1528, 2
        %v1628 = vsel %vm1025, %v1625, %v1627
        %v1629 = vrot.slane %v1529, 2
        %v1630 = vrot.slane %v1530, 2
        %v1631 = vsel %vm1025, %v1629, %v1630
        %v1632 = vrot.slane %v1531, 2
        %v1633 = vsel %vm1025, %v1630, %v1632
        %v1634 = vrot.slane %v1532, 2
        %v1635 = vrot.slane %v1533, 2
        %v1636 = vsel %vm1025, %v1634, %v1635
        %v1637 = vrot.slane %v1534, 2
        %v1638 = vsel %vm1025, %v1635, %v1637
        %v1639 = vrot.slane %v1535, 2
        %v1640 = vrot.slane %v1536, 2
        %v1641 = vsel %vm1025, %v1639, %v1640
        %v1642 = vrot.slane %v1537, 2
        %v1643 = vsel %vm1025, %v1640, %v1642
        %v1644 = vrot.slane %v1538, 2
        %v1645 = vrot.slane %v1539, 2
        %v1646 = vsel %vm1025, %v1644, %v1645
        %v1647 = vrot.slane %v1540, 2
        %v1648 = vsel %vm1025, %v1645, %v1647
        %v1649 = vrot.slane %v1541, 2
        %v1650 = vrot.slane %v1542, 2
        %v1651 = vsel %vm1025, %v1649, %v1650
        %v1652 = vrot.slane %v1543, 2
        %v1653 = vsel %vm1025, %v1650, %v1652
        %v1654 = vrot.slane %v1544, 2
        %v1655 = vrot.slane %v1545, 2
        %v1656 = vsel %vm1025, %v1654, %v1655
        %v1657 = vrot.slane %v1546, 2
        %v1658 = vsel %vm1025, %v1655, %v1657
        %v1659 = vrot.slane %v1547, 2
        %v1660 = vrot.slane %v1548, 2
        %v1661 = vsel %vm1025, %v1659, %v1660
        %v1662 = vrot.slane %v1549, 2
        %v1663 = vsel %vm1025, %v1660, %v1662
        %v1664 = vrot.slane %v1550, 2
        %v1665 = vrot.slane %v1551, 2
        %v1666 = vsel %vm1025, %v1664, %v1665
        %v1667 = vrot.slane %v1552, 2
        %v1668 = vsel %vm1025, %v1665, %v1667
        %v1669 = vrot.slane %v1553, 2
        %v1670 = vrot.slane %v1554, 2
        %v1671 = vsel %vm1025, %v1669, %v1670
        %v1672 = vrot.slane %v1555, 2
        %v1673 = vsel %vm1025, %v1670, %v1672
        %v1674 = vrot.slane %v1556, 2
        %v1675 = vrot.slane %v1557, 2
        %v1676 = vsel %vm1025, %v1674, %v1675
        %v1677 = vrot.slane %v1558, 2
        %v1678 = vsel %vm1025, %v1675, %v1677
        %v1679 = vrot.slane %v1559, 2
        %v1680 = vrot.slane %v1560, 2
        %v1681 = vsel %vm1025, %v1679, %v1680
        %v1682 = vrot.slane %v1561, 2
        %v1683 = vsel %vm1025, %v1680, %v1682
        %v1684 = vrot.slane %v1562, 2
        %v1685 = vrot.slane %v1563, 2
        %v1686 = vsel %vm1025, %v1684, %v1685
        %v1687 = vrot.slane %v1564, 2
        %v1688 = vsel %vm1025, %v1685, %v1687
        %v1689 = vrot.slane %v1565, 2
        %v1690 = vrot.slane %v1566, 2
        %v1691 = vsel %vm1025, %v1689, %v1690
        %v1692 = vrot.slane %v1567, 2
        %v1693 = vsel %vm1025, %v1690, %v1692
        %v1694 = vrot.slane %v1568, 2
        %v1695 = vrot.slane %v1569, 2
        %v1696 = vsel %vm1025, %v1694, %v1695
        %v1697 = vrot.slane %v1570, 2
        %v1698 = vsel %vm1025, %v1695, %v1697
        %v1731 = vmax.f32 %v1363, %v1621
        %v1732 = vmax.f32 %v1364, %v1623
        %v1733 = vmax.f32 %v1365, %v1626
        %v1734 = vmax.f32 %v1366, %v1628
        %v1735 = vmax.f32 %v1367, %v1631
        %v1736 = vmax.f32 %v1368, %v1633
        %v1737 = vmax.f32 %v1369, %v1636
        %v1738 = vmax.f32 %v1370, %v1638
        %v1739 = vmax.f32 %v1371, %v1641
        %v1740 = vmax.f32 %v1372, %v1643
        %v1741 = vmax.f32 %v1373, %v1646
        %v1742 = vmax.f32 %v1374, %v1648
        %v1743 = vmax.f32 %v1375, %v1651
        %v1744 = vmax.f32 %v1376, %v1653
        %v1745 = vmax.f32 %v1377, %v1656
        %v1746 = vmax.f32 %v1378, %v1658
        %v1747 = vmax.f32 %v1379, %v1661
        %v1748 = vmax.f32 %v1380, %v1663
        %v1749 = vmax.f32 %v1381, %v1666
        %v1750 = vmax.f32 %v1382, %v1668
        %v1751 = vmax.f32 %v1383, %v1671
        %v1752 = vmax.f32 %v1384, %v1673
        %v1753 = vmax.f32 %v1385, %v1676
        %v1754 = vmax.f32 %v1386, %v1678
        %v1755 = vmax.f32 %v1387, %v1681
        %v1756 = vmax.f32 %v1388, %v1683
        %v1757 = vmax.f32 %v1389, %v1686
        %v1758 = vmax.f32 %v1390, %v1688
        %v1759 = vmax.f32 %v1391, %v1691
        %v1760 = vmax.f32 %v1392, %v1693
        %v1761 = vmax.f32 %v1393, %v1696
        %v1762 = vmax.f32 %v1394, %v1698
        %vm1763 = vcmask 1041408
        %v1764 = vrot.slane %v961, 6
        %v1765 = vrot.slane %v867, 6
        %v1766 = vsel %vm1763, %v1764, %v1765
        %v1767 = vrot.slane %v977, 6
        %v1768 = vsel %vm1763, %v1765, %v1767
        %v1769 = vrot.slane %v962, 6
        %v1770 = vrot.slane %v870, 6
        %v1771 = vsel %vm1763, %v1769, %v1770
        %v1772 = vrot.slane %v978, 6
        %v1773 = vsel %vm1763, %v1770, %v1772
        %v1774 = vrot.slane %v963, 6
        %v1775 = vrot.slane %v873, 6
        %v1776 = vsel %vm1763, %v1774, %v1775
        %v1777 = vrot.slane %v979, 6
        %v1778 = vsel %vm1763, %v1775, %v1777
        %v1779 = vrot.slane %v964, 6
        %v1780 = vrot.slane %v876, 6
        %v1781 = vsel %vm1763, %v1779, %v1780
        %v1782 = vrot.slane %v980, 6
        %v1783 = vsel %vm1763, %v1780, %v1782
        %v1784 = vrot.slane %v965, 6
        %v1785 = vrot.slane %v879, 6
        %v1786 = vsel %vm1763, %v1784, %v1785
        %v1787 = vrot.slane %v981, 6
        %v1788 = vsel %vm1763, %v1785, %v1787
        %v1789 = vrot.slane %v966, 6
        %v1790 = vrot.slane %v882, 6
        %v1791 = vsel %vm1763, %v1789, %v1790
        %v1792 = vrot.slane %v982, 6
        %v1793 = vsel %vm1763, %v1790, %v1792
        %v1794 = vrot.slane %v967, 6
        %v1795 = vrot.slane %v885, 6
        %v1796 = vsel %vm1763, %v1794, %v1795
        %v1797 = vrot.slane %v983, 6
        %v1798 = vsel %vm1763, %v1795, %v1797
        %v1799 = vrot.slane %v968, 6
        %v1800 = vrot.slane %v888, 6
        %v1801 = vsel %vm1763, %v1799, %v1800
        %v1802 = vrot.slane %v984, 6
        %v1803 = vsel %vm1763, %v1800, %v1802
        %v1804 = vrot.slane %v969, 6
        %v1805 = vrot.slane %v891, 6
        %v1806 = vsel %vm1763, %v1804, %v1805
        %v1807 = vrot.slane %v985, 6
        %v1808 = vsel %vm1763, %v1805, %v1807
        %v1809 = vrot.slane %v970, 6
        %v1810 = vrot.slane %v894, 6
        %v1811 = vsel %vm1763, %v1809, %v1810
        %v1812 = vrot.slane %v986, 6
        %v1813 = vsel %vm1763, %v1810, %v1812
        %v1814 = vrot.slane %v971, 6
        %v1815 = vrot.slane %v897, 6
        %v1816 = vsel %vm1763, %v1814, %v1815
        %v1817 = vrot.slane %v987, 6
        %v1818 = vsel %vm1763, %v1815, %v1817
        %v1819 = vrot.slane %v972, 6
        %v1820 = vrot.slane %v900, 6
        %v1821 = vsel %vm1763, %v1819, %v1820
        %v1822 = vrot.slane %v988, 6
        %v1823 = vsel %vm1763, %v1820, %v1822
        %v1824 = vrot.slane %v973, 6
        %v1825 = vrot.slane %v903, 6
        %v1826 = vsel %vm1763, %v1824, %v1825
        %v1827 = vrot.slane %v989, 6
        %v1828 = vsel %vm1763, %v1825, %v1827
        %v1829 = vrot.slane %v974, 6
        %v1830 = vrot.slane %v906, 6
        %v1831 = vsel %vm1763, %v1829, %v1830
        %v1832 = vrot.slane %v990, 6
        %v1833 = vsel %vm1763, %v1830, %v1832
        %v1834 = vrot.slane %v975, 6
        %v1835 = vrot.slane %v909, 6
        %v1836 = vsel %vm1763, %v1834, %v1835
        %v1837 = vrot.slane %v991, 6
        %v1838 = vsel %vm1763, %v1835, %v1837
        %v1839 = vrot.slane %v976, 6
        %v1840 = vrot.slane %v912, 6
        %v1841 = vsel %vm1763, %v1839, %v1840
        %v1842 = vrot.slane %v992, 6
        %v1843 = vsel %vm1763, %v1840, %v1842
        %v1892 = vmax.f32 %v961, %v1766
        %v1893 = vmax.f32 %v867, %v1768
        %v1894 = vmax.f32 %v977, %v1767
        %v1895 = vmax.f32 %v962, %v1771
        %v1896 = vmax.f32 %v870, %v1773
        %v1897 = vmax.f32 %v978, %v1772
        %v1898 = vmax.f32 %v963, %v1776
        %v1899 = vmax.f32 %v873, %v1778
        %v1900 = vmax.f32 %v979, %v1777
        %v1901 = vmax.f32 %v964, %v1781
        %v1902 = vmax.f32 %v876, %v1783
        %v1903 = vmax.f32 %v980, %v1782
        %v1904 = vmax.f32 %v965, %v1786
        %v1905 = vmax.f32 %v879, %v1788
        %v1906 = vmax.f32 %v981, %v1787
        %v1907 = vmax.f32 %v966, %v1791
        %v1908 = vmax.f32 %v882, %v1793
        %v1909 = vmax.f32 %v982, %v1792
        %v1910 = vmax.f32 %v967, %v1796
        %v1911 = vmax.f32 %v885, %v1798
        %v1912 = vmax.f32 %v983, %v1797
        %v1913 = vmax.f32 %v968, %v1801
        %v1914 = vmax.f32 %v888, %v1803
        %v1915 = vmax.f32 %v984, %v1802
        %v1916 = vmax.f32 %v969, %v1806
        %v1917 = vmax.f32 %v891, %v1808
        %v1918 = vmax.f32 %v985, %v1807
        %v1919 = vmax.f32 %v970, %v1811
        %v1920 = vmax.f32 %v894, %v1813
        %v1921 = vmax.f32 %v986, %v1812
        %v1922 = vmax.f32 %v971, %v1816
        %v1923 = vmax.f32 %v897, %v1818
        %v1924 = vmax.f32 %v987, %v1817
        %v1925 = vmax.f32 %v972, %v1821
        %v1926 = vmax.f32 %v900, %v1823
        %v1927 = vmax.f32 %v988, %v1822
        %v1928 = vmax.f32 %v973, %v1826
        %v1929 = vmax.f32 %v903, %v1828
        %v1930 = vmax.f32 %v989, %v1827
        %v1931 = vmax.f32 %v974, %v1831
        %v1932 = vmax.f32 %v906, %v1833
        %v1933 = vmax.f32 %v990, %v1832
        %v1934 = vmax.f32 %v975, %v1836
        %v1935 = vmax.f32 %v909, %v1838
        %v1936 = vmax.f32 %v991, %v1837
        %v1937 = vmax.f32 %v976, %v1841
        %v1938 = vmax.f32 %v912, %v1843
        %v1939 = vmax.f32 %v992, %v1842
        %vm1988 = vcmask 1046528
        %v1989 = vrot.slane %v1892, 1
        %v1990 = vrot.slane %v1893, 1
        %v1991 = vsel %vm1988, %v1989, %v1990
        %v1992 = vrot.slane %v1894, 1
        %v1993 = vsel %vm1988, %v1990, %v1992
        %v1994 = vrot.slane %v1895, 1
        %v1995 = vrot.slane %v1896, 1
        %v1996 = vsel %vm1988, %v1994, %v1995
        %v1997 = vrot.slane %v1897, 1
        %v1998 = vsel %vm1988, %v1995, %v1997
        %v1999 = vrot.slane %v1898, 1
        %v2000 = vrot.slane %v1899, 1
        %v2001 = vsel %vm1988, %v1999, %v2000
        %v2002 = vrot.slane %v1900, 1
        %v2003 = vsel %vm1988, %v2000, %v2002
        %v2004 = vrot.slane %v1901, 1
        %v2005 = vrot.slane %v1902, 1
        %v2006 = vsel %vm1988, %v2004, %v2005
        %v2007 = vrot.slane %v1903, 1
        %v2008 = vsel %vm1988, %v2005, %v2007
        %v2009 = vrot.slane %v1904, 1
        %v2010 = vrot.slane %v1905, 1
        %v2011 = vsel %vm1988, %v2009, %v2010
        %v2012 = vrot.slane %v1906, 1
        %v2013 = vsel %vm1988, %v2010, %v2012
        %v2014 = vrot.slane %v1907, 1
        %v2015 = vrot.slane %v1908, 1
        %v2016 = vsel %vm1988, %v2014, %v2015
        %v2017 = vrot.slane %v1909, 1
        %v2018 = vsel %vm1988, %v2015, %v2017
        %v2019 = vrot.slane %v1910, 1
        %v2020 = vrot.slane %v1911, 1
        %v2021 = vsel %vm1988, %v2019, %v2020
        %v2022 = vrot.slane %v1912, 1
        %v2023 = vsel %vm1988, %v2020, %v2022
        %v2024 = vrot.slane %v1913, 1
        %v2025 = vrot.slane %v1914, 1
        %v2026 = vsel %vm1988, %v2024, %v2025
        %v2027 = vrot.slane %v1915, 1
        %v2028 = vsel %vm1988, %v2025, %v2027
        %v2029 = vrot.slane %v1916, 1
        %v2030 = vrot.slane %v1917, 1
        %v2031 = vsel %vm1988, %v2029, %v2030
        %v2032 = vrot.slane %v1918, 1
        %v2033 = vsel %vm1988, %v2030, %v2032
        %v2034 = vrot.slane %v1919, 1
        %v2035 = vrot.slane %v1920, 1
        %v2036 = vsel %vm1988, %v2034, %v2035
        %v2037 = vrot.slane %v1921, 1
        %v2038 = vsel %vm1988, %v2035, %v2037
        %v2039 = vrot.slane %v1922, 1
        %v2040 = vrot.slane %v1923, 1
        %v2041 = vsel %vm1988, %v2039, %v2040
        %v2042 = vrot.slane %v1924, 1
        %v2043 = vsel %vm1988, %v2040, %v2042
        %v2044 = vrot.slane %v1925, 1
        %v2045 = vrot.slane %v1926, 1
        %v2046 = vsel %vm1988, %v2044, %v2045
        %v2047 = vrot.slane %v1927, 1
        %v2048 = vsel %vm1988, %v2045, %v2047
        %v2049 = vrot.slane %v1928, 1
        %v2050 = vrot.slane %v1929, 1
        %v2051 = vsel %vm1988, %v2049, %v2050
        %v2052 = vrot.slane %v1930, 1
        %v2053 = vsel %vm1988, %v2050, %v2052
        %v2054 = vrot.slane %v1931, 1
        %v2055 = vrot.slane %v1932, 1
        %v2056 = vsel %vm1988, %v2054, %v2055
        %v2057 = vrot.slane %v1933, 1
        %v2058 = vsel %vm1988, %v2055, %v2057
        %v2059 = vrot.slane %v1934, 1
        %v2060 = vrot.slane %v1935, 1
        %v2061 = vsel %vm1988, %v2059, %v2060
        %v2062 = vrot.slane %v1936, 1
        %v2063 = vsel %vm1988, %v2060, %v2062
        %v2064 = vrot.slane %v1937, 1
        %v2065 = vrot.slane %v1938, 1
        %v2066 = vsel %vm1988, %v2064, %v2065
        %v2067 = vrot.slane %v1939, 1
        %v2068 = vsel %vm1988, %v2065, %v2067
        %v2101 = vmax.f32 %v1731, %v1991
        %v2102 = vmax.f32 %v1732, %v1993
        %v2103 = vmax.f32 %v1733, %v1996
        %v2104 = vmax.f32 %v1734, %v1998
        %v2105 = vmax.f32 %v1735, %v2001
        %v2106 = vmax.f32 %v1736, %v2003
        %v2107 = vmax.f32 %v1737, %v2006
        %v2108 = vmax.f32 %v1738, %v2008
        %v2109 = vmax.f32 %v1739, %v2011
        %v2110 = vmax.f32 %v1740, %v2013
        %v2111 = vmax.f32 %v1741, %v2016
        %v2112 = vmax.f32 %v1742, %v2018
        %v2113 = vmax.f32 %v1743, %v2021
        %v2114 = vmax.f32 %v1744, %v2023
        %v2115 = vmax.f32 %v1745, %v2026
        %v2116 = vmax.f32 %v1746, %v2028
        %v2117 = vmax.f32 %v1747, %v2031
        %v2118 = vmax.f32 %v1748, %v2033
        %v2119 = vmax.f32 %v1749, %v2036
        %v2120 = vmax.f32 %v1750, %v2038
        %v2121 = vmax.f32 %v1751, %v2041
        %v2122 = vmax.f32 %v1752, %v2043
        %v2123 = vmax.f32 %v1753, %v2046
        %v2124 = vmax.f32 %v1754, %v2048
        %v2125 = vmax.f32 %v1755, %v2051
        %v2126 = vmax.f32 %v1756, %v2053
        %v2127 = vmax.f32 %v1757, %v2056
        %v2128 = vmax.f32 %v1758, %v2058
        %v2129 = vmax.f32 %v1759, %v2061
        %v2130 = vmax.f32 %v1760, %v2063
        %v2131 = vmax.f32 %v1761, %v2066
        %v2132 = vmax.f32 %v1762, %v2068
        %v2133 = vmax.f32 %v961, %v867
        %v2134 = vmax.f32 %v867, %v977
        %v2135 = vmax.f32 %v962, %v870
        %v2136 = vmax.f32 %v870, %v978
        %v2137 = vmax.f32 %v963, %v873
        %v2138 = vmax.f32 %v873, %v979
        %v2139 = vmax.f32 %v964, %v876
        %v2140 = vmax.f32 %v876, %v980
        %v2141 = vmax.f32 %v965, %v879
        %v2142 = vmax.f32 %v879, %v981
        %v2143 = vmax.f32 %v966, %v882
        %v2144 = vmax.f32 %v882, %v982
        %v2145 = vmax.f32 %v967, %v885
        %v2146 = vmax.f32 %v885, %v983
        %v2147 = vmax.f32 %v968, %v888
        %v2148 = vmax.f32 %v888, %v984
        %v2149 = vmax.f32 %v969, %v891
        %v2150 = vmax.f32 %v891, %v985
        %v2151 = vmax.f32 %v970, %v894
        %v2152 = vmax.f32 %v894, %v986
        %v2153 = vmax.f32 %v971, %v897
        %v2154 = vmax.f32 %v897, %v987
        %v2155 = vmax.f32 %v972, %v900
        %v2156 = vmax.f32 %v900, %v988
        %v2157 = vmax.f32 %v973, %v903
        %v2158 = vmax.f32 %v903, %v989
        %v2159 = vmax.f32 %v974, %v906
        %v2160 = vmax.f32 %v906, %v990
        %v2161 = vmax.f32 %v975, %v909
        %v2162 = vmax.f32 %v909, %v991
        %v2163 = vmax.f32 %v976, %v912
        %v2164 = vmax.f32 %v912, %v992
        %v2165 = vmax.f32 %v2101, %v2133
        %v2166 = vmax.f32 %v2102, %v2134
        %v2167 = vmax.f32 %v2103, %v2135
        %v2168 = vmax.f32 %v2104, %v2136
        %v2169 = vmax.f32 %v2105, %v2137
        %v2170 = vmax.f32 %v2106, %v2138
        %v2171 = vmax.f32 %v2107, %v2139
        %v2172 = vmax.f32 %v2108, %v2140
        %v2173 = vmax.f32 %v2109, %v2141
        %v2174 = vmax.f32 %v2110, %v2142
        %v2175 = vmax.f32 %v2111, %v2143
        %v2176 = vmax.f32 %v2112, %v2144
        %v2177 = vmax.f32 %v2113, %v2145
        %v2178 = vmax.f32 %v2114, %v2146
        %v2179 = vmax.f32 %v2115, %v2147
        %v2180 = vmax.f32 %v2116, %v2148
        %v2181 = vmax.f32 %v2117, %v2149
        %v2182 = vmax.f32 %v2118, %v2150
        %v2183 = vmax.f32 %v2119, %v2151
        %v2184 = vmax.f32 %v2120, %v2152
        %v2185 = vmax.f32 %v2121, %v2153
        %v2186 = vmax.f32 %v2122, %v2154
        %v2187 = vmax.f32 %v2123, %v2155
        %v2188 = vmax.f32 %v2124, %v2156
        %v2189 = vmax.f32 %v2125, %v2157
        %v2190 = vmax.f32 %v2126, %v2158
        %v2191 = vmax.f32 %v2127, %v2159
        %v2192 = vmax.f32 %v2128, %v2160
        %v2193 = vmax.f32 %v2129, %v2161
        %v2194 = vmax.f32 %v2130, %v2162
        %v2195 = vmax.f32 %v2131, %v2163
        %v2196 = vmax.f32 %v2132, %v2164
        %v2197 = vmax.f32 %v1735, %v1737
        %v2198 = vmax.f32 %v1736, %v1738
        %v2199 = vmax.f32 %v1737, %v1739
        %v2200 = vmax.f32 %v1738, %v1740
        %v2201 = vmax.f32 %v1739, %v1741
        %v2202 = vmax.f32 %v1740, %v1742
        %v2203 = vmax.f32 %v1741, %v1743
        %v2204 = vmax.f32 %v1742, %v1744
        %v2205 = vmax.f32 %v1743, %v1745
        %v2206 = vmax.f32 %v1744, %v1746
        %v2207 = vmax.f32 %v1745, %v1747
        %v2208 = vmax.f32 %v1746, %v1748
        %v2209 = vmax.f32 %v1747, %v1749
        %v2210 = vmax.f32 %v1748, %v1750
        %v2211 = vmax.f32 %v1749, %v1751
        %v2212 = vmax.f32 %v1750, %v1752
        %v2213 = vmax.f32 %v2197, %v1739
        %v2214 = vmax.f32 %v2198, %v1740
        %v2215 = vmax.f32 %v2199, %v1741
        %v2216 = vmax.f32 %v2200, %v1742
        %v2217 = vmax.f32 %v2201, %v1743
        %v2218 = vmax.f32 %v2202, %v1744
        %v2219 = vmax.f32 %v2203, %v1745
        %v2220 = vmax.f32 %v2204, %v1746
        %v2221 = vmax.f32 %v2205, %v1747
        %v2222 = vmax.f32 %v2206, %v1748
        %v2223 = vmax.f32 %v2207, %v1749
        %v2224 = vmax.f32 %v2208, %v1750
        %v2225 = vmax.f32 %v2209, %v1751
        %v2226 = vmax.f32 %v2210, %v1752
        %v2227 = vmax.f32 %v2211, %v1753
        %v2228 = vmax.f32 %v2212, %v1754
        %v2229 = vmax.f32 %v2213, %v1741
        %v2230 = vmax.f32 %v2214, %v1742
        %v2231 = vmax.f32 %v2215, %v1743
        %v2232 = vmax.f32 %v2216, %v1744
        %v2233 = vmax.f32 %v2217, %v1745
        %v2234 = vmax.f32 %v2218, %v1746
        %v2235 = vmax.f32 %v2219, %v1747
        %v2236 = vmax.f32 %v2220, %v1748
        %v2237 = vmax.f32 %v2221, %v1749
        %v2238 = vmax.f32 %v2222, %v1750
        %v2239 = vmax.f32 %v2223, %v1751
        %v2240 = vmax.f32 %v2224, %v1752
        %v2241 = vmax.f32 %v2225, %v1753
        %v2242 = vmax.f32 %v2226, %v1754
        %v2243 = vmax.f32 %v2227, %v1755
        %v2244 = vmax.f32 %v2228, %v1756
        %v2245 = vmax.f32 %v2229, %v1743
        %v2246 = vmax.f32 %v2230, %v1744
        %v2247 = vmax.f32 %v2231, %v1745
        %v2248 = vmax.f32 %v2232, %v1746
        %v2249 = vmax.f32 %v2233, %v1747
        %v2250 = vmax.f32 %v2234, %v1748
        %v2251 = vmax.f32 %v2235, %v1749
        %v2252 = vmax.f32 %v2236, %v1750
        %v2253 = vmax.f32 %v2237, %v1751
        %v2254 = vmax.f32 %v2238, %v1752
        %v2255 = vmax.f32 %v2239, %v1753
        %v2256 = vmax.f32 %v2240, %v1754
        %v2257 = vmax.f32 %v2241, %v1755
        %v2258 = vmax.f32 %v2242, %v1756
        %v2259 = vmax.f32 %v2243, %v1757
        %v2260 = vmax.f32 %v2244, %v1758
        %v2261 = vmax.f32 %v2103, %v2105
        %v2262 = vmax.f32 %v2104, %v2106
        %v2263 = vmax.f32 %v2105, %v2107
        %v2264 = vmax.f32 %v2106, %v2108
        %v2265 = vmax.f32 %v2107, %v2109
        %v2266 = vmax.f32 %v2108, %v2110
        %v2267 = vmax.f32 %v2109, %v2111
        %v2268 = vmax.f32 %v2110, %v2112
        %v2269 = vmax.f32 %v2111, %v2113
        %v2270 = vmax.f32 %v2112, %v2114
        %v2271 = vmax.f32 %v2113, %v2115
        %v2272 = vmax.f32 %v2114, %v2116
        %v2273 = vmax.f32 %v2115, %v2117
        %v2274 = vmax.f32 %v2116, %v2118
        %v2275 = vmax.f32 %v2117, %v2119
        %v2276 = vmax.f32 %v2118, %v2120
        %v2277 = vmax.f32 %v2261, %v2107
        %v2278 = vmax.f32 %v2262, %v2108
        %v2279 = vmax.f32 %v2263, %v2109
        %v2280 = vmax.f32 %v2264, %v2110
        %v2281 = vmax.f32 %v2265, %v2111
        %v2282 = vmax.f32 %v2266, %v2112
        %v2283 = vmax.f32 %v2267, %v2113
        %v2284 = vmax.f32 %v2268, %v2114
        %v2285 = vmax.f32 %v2269, %v2115
        %v2286 = vmax.f32 %v2270, %v2116
        %v2287 = vmax.f32 %v2271, %v2117
        %v2288 = vmax.f32 %v2272, %v2118
        %v2289 = vmax.f32 %v2273, %v2119
        %v2290 = vmax.f32 %v2274, %v2120
        %v2291 = vmax.f32 %v2275, %v2121
        %v2292 = vmax.f32 %v2276, %v2122
        %v2293 = vmax.f32 %v2277, %v2109
        %v2294 = vmax.f32 %v2278, %v2110
        %v2295 = vmax.f32 %v2279, %v2111
        %v2296 = vmax.f32 %v2280, %v2112
        %v2297 = vmax.f32 %v2281, %v2113
        %v2298 = vmax.f32 %v2282, %v2114
        %v2299 = vmax.f32 %v2283, %v2115
        %v2300 = vmax.f32 %v2284, %v2116
        %v2301 = vmax.f32 %v2285, %v2117
        %v2302 = vmax.f32 %v2286, %v2118
        %v2303 = vmax.f32 %v2287, %v2119
        %v2304 = vmax.f32 %v2288, %v2120
        %v2305 = vmax.f32 %v2289, %v2121
        %v2306 = vmax.f32 %v2290, %v2122
        %v2307 = vmax.f32 %v2291, %v2123
        %v2308 = vmax.f32 %v2292, %v2124
        %v2309 = vmax.f32 %v2293, %v2111
        %v2310 = vmax.f32 %v2294, %v2112
        %v2311 = vmax.f32 %v2295, %v2113
        %v2312 = vmax.f32 %v2296, %v2114
        %v2313 = vmax.f32 %v2297, %v2115
        %v2314 = vmax.f32 %v2298, %v2116
        %v2315 = vmax.f32 %v2299, %v2117
        %v2316 = vmax.f32 %v2300, %v2118
        %v2317 = vmax.f32 %v2301, %v2119
        %v2318 = vmax.f32 %v2302, %v2120
        %v2319 = vmax.f32 %v2303, %v2121
        %v2320 = vmax.f32 %v2304, %v2122
        %v2321 = vmax.f32 %v2305, %v2123
        %v2322 = vmax.f32 %v2306, %v2124
        %v2323 = vmax.f32 %v2307, %v2125
        %v2324 = vmax.f32 %v2308, %v2126
        %v2325 = vmax.f32 %v2309, %v2113
        %v2326 = vmax.f32 %v2310, %v2114
        %v2327 = vmax.f32 %v2311, %v2115
        %v2328 = vmax.f32 %v2312, %v2116
        %v2329 = vmax.f32 %v2313, %v2117
        %v2330 = vmax.f32 %v2314, %v2118
        %v2331 = vmax.f32 %v2315, %v2119
        %v2332 = vmax.f32 %v2316, %v2120
        %v2333 = vmax.f32 %v2317, %v2121
        %v2334 = vmax.f32 %v2318, %v2122
        %v2335 = vmax.f32 %v2319, %v2123
        %v2336 = vmax.f32 %v2320, %v2124
        %v2337 = vmax.f32 %v2321, %v2125
        %v2338 = vmax.f32 %v2322, %v2126
        %v2339 = vmax.f32 %v2323, %v2127
        %v2340 = vmax.f32 %v2324, %v2128
        %v2341 = vmax.f32 %v2325, %v2115
        %v2342 = vmax.f32 %v2326, %v2116
        %v2343 = vmax.f32 %v2327, %v2117
        %v2344 = vmax.f32 %v2328, %v2118
        %v2345 = vmax.f32 %v2329, %v2119
        %v2346 = vmax.f32 %v2330, %v2120
        %v2347 = vmax.f32 %v2331, %v2121
        %v2348 = vmax.f32 %v2332, %v2122
        %v2349 = vmax.f32 %v2333, %v2123
        %v2350 = vmax.f32 %v2334, %v2124
        %v2351 = vmax.f32 %v2335, %v2125
        %v2352 = vmax.f32 %v2336, %v2126
        %v2353 = vmax.f32 %v2337, %v2127
        %v2354 = vmax.f32 %v2338, %v2128
        %v2355 = vmax.f32 %v2339, %v2129
        %v2356 = vmax.f32 %v2340, %v2130
        %v2357 = vmax.f32 %v2165, %v2167
        %v2358 = vmax.f32 %v2166, %v2168
        %v2359 = vmax.f32 %v2167, %v2169
        %v2360 = vmax.f32 %v2168, %v2170
        %v2361 = vmax.f32 %v2169, %v2171
        %v2362 = vmax.f32 %v2170, %v2172
        %v2363 = vmax.f32 %v2171, %v2173
        %v2364 = vmax.f32 %v2172, %v2174
        %v2365 = vmax.f32 %v2173, %v2175
        %v2366 = vmax.f32 %v2174, %v2176
        %v2367 = vmax.f32 %v2175, %v2177
        %v2368 = vmax.f32 %v2176, %v2178
        %v2369 = vmax.f32 %v2177, %v2179
        %v2370 = vmax.f32 %v2178, %v2180
        %v2371 = vmax.f32 %v2179, %v2181
        %v2372 = vmax.f32 %v2180, %v2182
        %v2373 = vmax.f32 %v2357, %v2169
        %v2374 = vmax.f32 %v2358, %v2170
        %v2375 = vmax.f32 %v2359, %v2171
        %v2376 = vmax.f32 %v2360, %v2172
        %v2377 = vmax.f32 %v2361, %v2173
        %v2378 = vmax.f32 %v2362, %v2174
        %v2379 = vmax.f32 %v2363, %v2175
        %v2380 = vmax.f32 %v2364, %v2176
        %v2381 = vmax.f32 %v2365, %v2177
        %v2382 = vmax.f32 %v2366, %v2178
        %v2383 = vmax.f32 %v2367, %v2179
        %v2384 = vmax.f32 %v2368, %v2180
        %v2385 = vmax.f32 %v2369, %v2181
        %v2386 = vmax.f32 %v2370, %v2182
        %v2387 = vmax.f32 %v2371, %v2183
        %v2388 = vmax.f32 %v2372, %v2184
        %v2389 = vmax.f32 %v2373, %v2171
        %v2390 = vmax.f32 %v2374, %v2172
        %v2391 = vmax.f32 %v2375, %v2173
        %v2392 = vmax.f32 %v2376, %v2174
        %v2393 = vmax.f32 %v2377, %v2175
        %v2394 = vmax.f32 %v2378, %v2176
        %v2395 = vmax.f32 %v2379, %v2177
        %v2396 = vmax.f32 %v2380, %v2178
        %v2397 = vmax.f32 %v2381, %v2179
        %v2398 = vmax.f32 %v2382, %v2180
        %v2399 = vmax.f32 %v2383, %v2181
        %v2400 = vmax.f32 %v2384, %v2182
        %v2401 = vmax.f32 %v2385, %v2183
        %v2402 = vmax.f32 %v2386, %v2184
        %v2403 = vmax.f32 %v2387, %v2185
        %v2404 = vmax.f32 %v2388, %v2186
        %v2405 = vmax.f32 %v2389, %v2173
        %v2406 = vmax.f32 %v2390, %v2174
        %v2407 = vmax.f32 %v2391, %v2175
        %v2408 = vmax.f32 %v2392, %v2176
        %v2409 = vmax.f32 %v2393, %v2177
        %v2410 = vmax.f32 %v2394, %v2178
        %v2411 = vmax.f32 %v2395, %v2179
        %v2412 = vmax.f32 %v2396, %v2180
        %v2413 = vmax.f32 %v2397, %v2181
        %v2414 = vmax.f32 %v2398, %v2182
        %v2415 = vmax.f32 %v2399, %v2183
        %v2416 = vmax.f32 %v2400, %v2184
        %v2417 = vmax.f32 %v2401, %v2185
        %v2418 = vmax.f32 %v2402, %v2186
        %v2419 = vmax.f32 %v2403, %v2187
        %v2420 = vmax.f32 %v2404, %v2188
        %v2421 = vmax.f32 %v2405, %v2175
        %v2422 = vmax.f32 %v2406, %v2176
        %v2423 = vmax.f32 %v2407, %v2177
        %v2424 = vmax.f32 %v2408, %v2178
        %v2425 = vmax.f32 %v2409, %v2179
        %v2426 = vmax.f32 %v2410, %v2180
        %v2427 = vmax.f32 %v2411, %v2181
        %v2428 = vmax.f32 %v2412, %v2182
        %v2429 = vmax.f32 %v2413, %v2183
        %v2430 = vmax.f32 %v2414, %v2184
        %v2431 = vmax.f32 %v2415, %v2185
        %v2432 = vmax.f32 %v2416, %v2186
        %v2433 = vmax.f32 %v2417, %v2187
        %v2434 = vmax.f32 %v2418, %v2188
        %v2435 = vmax.f32 %v2419, %v2189
        %v2436 = vmax.f32 %v2420, %v2190
        %v2437 = vmax.f32 %v2421, %v2177
        %v2438 = vmax.f32 %v2422, %v2178
        %v2439 = vmax.f32 %v2423, %v2179
        %v2440 = vmax.f32 %v2424, %v2180
        %v2441 = vmax.f32 %v2425, %v2181
        %v2442 = vmax.f32 %v2426, %v2182
        %v2443 = vmax.f32 %v2427, %v2183
        %v2444 = vmax.f32 %v2428, %v2184
        %v2445 = vmax.f32 %v2429, %v2185
        %v2446 = vmax.f32 %v2430, %v2186
        %v2447 = vmax.f32 %v2431, %v2187
        %v2448 = vmax.f32 %v2432, %v2188
        %v2449 = vmax.f32 %v2433, %v2189
        %v2450 = vmax.f32 %v2434, %v2190
        %v2451 = vmax.f32 %v2435, %v2191
        %v2452 = vmax.f32 %v2436, %v2192
        %v2453 = vmax.f32 %v2437, %v2179
        %v2454 = vmax.f32 %v2438, %v2180
        %v2455 = vmax.f32 %v2439, %v2181
        %v2456 = vmax.f32 %v2440, %v2182
        %v2457 = vmax.f32 %v2441, %v2183
        %v2458 = vmax.f32 %v2442, %v2184
        %v2459 = vmax.f32 %v2443, %v2185
        %v2460 = vmax.f32 %v2444, %v2186
        %v2461 = vmax.f32 %v2445, %v2187
        %v2462 = vmax.f32 %v2446, %v2188
        %v2463 = vmax.f32 %v2447, %v2189
        %v2464 = vmax.f32 %v2448, %v2190
        %v2465 = vmax.f32 %v2449, %v2191
        %v2466 = vmax.f32 %v2450, %v2192
        %v2467 = vmax.f32 %v2451, %v2193
        %v2468 = vmax.f32 %v2452, %v2194
        %v2469 = vmax.f32 %v2453, %v2181
        %v2470 = vmax.f32 %v2454, %v2182
        %v2471 = vmax.f32 %v2455, %v2183
        %v2472 = vmax.f32 %v2456, %v2184
        %v2473 = vmax.f32 %v2457, %v2185
        %v2474 = vmax.f32 %v2458, %v2186
        %v2475 = vmax.f32 %v2459, %v2187
        %v2476 = vmax.f32 %v2460, %v2188
        %v2477 = vmax.f32 %v2461, %v2189
        %v2478 = vmax.f32 %v2462, %v2190
        %v2479 = vmax.f32 %v2463, %v2191
        %v2480 = vmax.f32 %v2464, %v2192
        %v2481 = vmax.f32 %v2465, %v2193
        %v2482 = vmax.f32 %v2466, %v2194
        %v2483 = vmax.f32 %v2467, %v2195
        %v2484 = vmax.f32 %v2468, %v2196
        %v2485 = vpack.c.bf16 %v713, %v712
        %v2486 = vpack.c.bf16 %v715, %v714
        %v2487 = vpack.c.bf16 %v717, %v716
        %v2488 = vpack.c.bf16 %v719, %v718
        %v2489 = vpack.c.bf16 %v721, %v720
        %v2490 = vpack.c.bf16 %v723, %v722
        %v2491 = vpack.c.bf16 %v725, %v724
        %v2492 = vpack.c.bf16 %v727, %v726
        %v2493 = vld [vmem:[%s3] sm:$0xf]
        %v2494 = vld [vmem:[%s3 + $0x4] sm:$0xf]
        %v2495 = vld [vmem:[%s3 + $0x8] sm:$0xf]
        %v2496 = vld [vmem:[%s3 + $0xc] sm:$0xf]
        %v2497 = vld [vmem:[%s3 + $0x10] sm:$0xf]
        %v2498 = vld [vmem:[%s3 + $0x14] sm:$0xf]
        %v2499 = vld [vmem:[%s3 + $0x18] sm:$0xf]
        %v2500 = vld [vmem:[%s3 + $0x1c] sm:$0xf]
        %v2501 = vld [vmem:[%s3 + $0x20] sm:$0xf]
        %v2502 = vld [vmem:[%s3 + $0x24] sm:$0xf]
        %v2503 = vld [vmem:[%s3 + $0x28] sm:$0xf]
        %v2504 = vld [vmem:[%s3 + $0x2c] sm:$0xf]
        %v2505 = vld [vmem:[%s3 + $0x30] sm:$0xf]
        %v2506 = vld [vmem:[%s3 + $0x34] sm:$0xf]
        %v2507 = vld [vmem:[%s3 + $0x38] sm:$0xf]
        %v2508 = vld [vmem:[%s3 + $0x3c] sm:$0xf]
        %v2509 = vld [vmem:[%s4] sm:$0x1]
        %v2511 = vlaneseq
        %v2512 = vshrl.u32 %v2511, 7
        %v2513 = vsub.s32 0, %v2512
        %v2514 = vrot.slane %v2509, %v2513
        %v2532 = vunpack.c.l.b16 %v2493
        %v2533 = vunpack.c.l.b16 %v2494
        %v2534 = vunpack.c.l.b16 %v2495
        %v2535 = vunpack.c.l.b16 %v2496
        %v2536 = vunpack.c.l.b16 %v2497
        %v2537 = vunpack.c.l.b16 %v2498
        %v2538 = vunpack.c.l.b16 %v2499
        %v2539 = vunpack.c.l.b16 %v2500
        %v2540 = vunpack.c.l.b16 %v2501
        %v2541 = vunpack.c.l.b16 %v2502
        %v2542 = vunpack.c.l.b16 %v2503
        %v2543 = vunpack.c.l.b16 %v2504
        %v2544 = vunpack.c.l.b16 %v2505
        %v2545 = vunpack.c.l.b16 %v2506
        %v2546 = vunpack.c.l.b16 %v2507
        %v2547 = vunpack.c.l.b16 %v2508
        %v2548 = vpack.c.b16 %v2533, %v2532
        %v2549 = vpack.c.b16 %v2535, %v2534
        %v2550 = vpack.c.b16 %v2537, %v2536
        %v2551 = vpack.c.b16 %v2539, %v2538
        %v2552 = vpack.c.b16 %v2541, %v2540
        %v2553 = vpack.c.b16 %v2543, %v2542
        %v2554 = vpack.c.b16 %v2545, %v2544
        %v2555 = vpack.c.b16 %v2547, %v2546
        %2564 = vmatprep.subr.bf16.mxu0 0
        %2565 = vmatpush1.bf16.msra.mxu0 %v2548
        %2566 = vmatprep.subr.bf16.mxu0 0
        %2567 = vmatpush1.bf16.msra.mxu0 %v2549
        %2568 = vmatprep.subr.bf16.mxu0 0
        %2569 = vmatpush1.bf16.msra.mxu0 %v2550
        %2570 = vmatprep.subr.bf16.mxu0 0
        %2571 = vmatpush1.bf16.msra.mxu0 %v2551
        %2572 = vmatprep.subr.bf16.mxu0 0
        %2573 = vmatpush1.bf16.msra.mxu0 %v2552
        %2574 = vmatprep.subr.bf16.mxu0 0
        %2575 = vmatpush1.bf16.msra.mxu0 %v2553
        %2576 = vmatprep.subr.bf16.mxu0 0
        %2577 = vmatpush1.bf16.msra.mxu0 %v2554
        %2578 = vmatprep.subr.bf16.mxu0 0
        %2579 = vmatpush1.bf16.msra.mxu0 %v2555
        %2580 = vmatprep.subr.bf16.mxu0 0
        %2581 = vmatpush1.bf16.msra.mxu0 0
        %2582 = vmatprep.subr.bf16.mxu0 0
        %2583 = vmatpush1.bf16.msra.mxu0 0
        %2584 = vmatprep.subr.bf16.mxu0 0
        %2585 = vmatpush1.bf16.msra.mxu0 0
        %2586 = vmatprep.subr.bf16.mxu0 0
        %2587 = vmatpush1.bf16.msra.mxu0 0
        %2588 = vmatprep.subr.bf16.mxu0 0
        %2589 = vmatpush1.bf16.msra.mxu0 0
        %2590 = vmatprep.subr.bf16.mxu0 0
        %2591 = vmatpush1.bf16.msra.mxu0 0
        %2592 = vmatprep.subr.bf16.mxu0 0
        %2593 = vmatpush1.bf16.msra.mxu0 0
        %2594 = vmatprep.subr.bf16.mxu0 0
        %2595 = vmatpush1.bf16.msra.mxu0 0
        %2596 = vmatprep.mubr.bf16.mxu0 0
        %2597 = vmatmul.mubr.bf16.gmra.mrb[0].mxu0 %v2485
        %v2598 = vpop.f32.mrb[0].mxu0
        %v2599 = vadd.f32 %v2514, %v2598
        %v2600 = vpop.f32.mrb[0].mxu0
        %v2601 = vpop.f32.mrb[0].mxu0
        %v2602 = vadd.f32 %v2514, %v2601
        %v2603 = vpop.f32.mrb[0].mxu0
        %2604 = vmatprep.mubr.bf16.mxu0 0
        %2605 = vmatmul.mubr.bf16.gmra.mrb[0].mxu0 %v2486
        %v2606 = vpop.f32.mrb[0].mxu0
        %v2607 = vadd.f32 %v2514, %v2606
        %v2608 = vpop.f32.mrb[0].mxu0
        %v2609 = vpop.f32.mrb[0].mxu0
        %v2610 = vadd.f32 %v2514, %v2609
        %v2611 = vpop.f32.mrb[0].mxu0
        %2612 = vmatprep.mubr.bf16.mxu0 0
        %2613 = vmatmul.mubr.bf16.gmra.mrb[0].mxu0 %v2487
        %v2614 = vpop.f32.mrb[0].mxu0
        %v2615 = vadd.f32 %v2514, %v2614
        %v2616 = vpop.f32.mrb[0].mxu0
        %v2617 = vpop.f32.mrb[0].mxu0
        %v2618 = vadd.f32 %v2514, %v2617
        %v2619 = vpop.f32.mrb[0].mxu0
        %2620 = vmatprep.mubr.bf16.mxu0 0
        %2621 = vmatmul.mubr.bf16.gmra.mrb[0].mxu0 %v2488
        %v2622 = vpop.f32.mrb[0].mxu0
        %v2623 = vadd.f32 %v2514, %v2622
        %v2624 = vpop.f32.mrb[0].mxu0
        %v2625 = vpop.f32.mrb[0].mxu0
        %v2626 = vadd.f32 %v2514, %v2625
        %v2627 = vpop.f32.mrb[0].mxu0
        %2628 = vmatprep.mubr.bf16.mxu0 0
        %2629 = vmatmul.mubr.bf16.gmra.mrb[0].mxu0 %v2489
        %v2630 = vpop.f32.mrb[0].mxu0
        %v2631 = vadd.f32 %v2514, %v2630
        %v2632 = vpop.f32.mrb[0].mxu0
        %v2633 = vpop.f32.mrb[0].mxu0
        %v2634 = vadd.f32 %v2514, %v2633
        %v2635 = vpop.f32.mrb[0].mxu0
        %2636 = vmatprep.mubr.bf16.mxu0 0
        %2637 = vmatmul.mubr.bf16.gmra.mrb[0].mxu0 %v2490
        %v2638 = vpop.f32.mrb[0].mxu0
        %v2639 = vadd.f32 %v2514, %v2638
        %v2640 = vpop.f32.mrb[0].mxu0
        %v2641 = vpop.f32.mrb[0].mxu0
        %v2642 = vadd.f32 %v2514, %v2641
        %v2643 = vpop.f32.mrb[0].mxu0
        %2644 = vmatprep.mubr.bf16.mxu0 0
        %2645 = vmatmul.mubr.bf16.gmra.mrb[0].mxu0 %v2491
        %v2646 = vpop.f32.mrb[0].mxu0
        %v2647 = vadd.f32 %v2514, %v2646
        %v2648 = vpop.f32.mrb[0].mxu0
        %v2649 = vpop.f32.mrb[0].mxu0
        %v2650 = vadd.f32 %v2514, %v2649
        %v2651 = vpop.f32.mrb[0].mxu0
        %2652 = vmatprep.mubr.bf16.mxu0 0
        %2653 = vmatmul.mubr.bf16.gmra.mrb[0].mxu0 %v2492
        %v2654 = vpop.f32.mrb[0].mxu0
        %v2655 = vadd.f32 %v2514, %v2654
        %v2656 = vpop.f32.mrb[0].mxu0
        %v2657 = vpop.f32.mrb[0].mxu0
        %v2658 = vadd.f32 %v2514, %v2657
        %v2659 = vpop.f32.mrb[0].mxu0
        %2660 = vdwg.mxu0
        %v2661 = vpack.c.bf16 %v2246, %v2245
        %v2662 = vpack.c.bf16 %v2248, %v2247
        %v2663 = vpack.c.bf16 %v2250, %v2249
        %v2664 = vpack.c.bf16 %v2252, %v2251
        %v2665 = vpack.c.bf16 %v2254, %v2253
        %v2666 = vpack.c.bf16 %v2256, %v2255
        %v2667 = vpack.c.bf16 %v2258, %v2257
        %v2668 = vpack.c.bf16 %v2260, %v2259
        %s2669 = scalar_lea.vmem %s3, 64
        %v2670 = vld [vmem:[%s2669] sm:$0xf]
        %v2671 = vld [vmem:[%s2669 + $0x4] sm:$0xf]
        %v2672 = vld [vmem:[%s2669 + $0x8] sm:$0xf]
        %v2673 = vld [vmem:[%s2669 + $0xc] sm:$0xf]
        %v2674 = vld [vmem:[%s2669 + $0x10] sm:$0xf]
        %v2675 = vld [vmem:[%s2669 + $0x14] sm:$0xf]
        %v2676 = vld [vmem:[%s2669 + $0x18] sm:$0xf]
        %v2677 = vld [vmem:[%s2669 + $0x1c] sm:$0xf]
        %v2678 = vld [vmem:[%s2669 + $0x20] sm:$0xf]
        %v2679 = vld [vmem:[%s2669 + $0x24] sm:$0xf]
        %v2680 = vld [vmem:[%s2669 + $0x28] sm:$0xf]
        %v2681 = vld [vmem:[%s2669 + $0x2c] sm:$0xf]
        %v2682 = vld [vmem:[%s2669 + $0x30] sm:$0xf]
        %v2683 = vld [vmem:[%s2669 + $0x34] sm:$0xf]
        %v2684 = vld [vmem:[%s2669 + $0x38] sm:$0xf]
        %v2685 = vld [vmem:[%s2669 + $0x3c] sm:$0xf]
        %v2702 = vunpack.c.l.b16 %v2670
        %v2703 = vunpack.c.l.b16 %v2671
        %v2704 = vunpack.c.l.b16 %v2672
        %v2705 = vunpack.c.l.b16 %v2673
        %v2706 = vunpack.c.l.b16 %v2674
        %v2707 = vunpack.c.l.b16 %v2675
        %v2708 = vunpack.c.l.b16 %v2676
        %v2709 = vunpack.c.l.b16 %v2677
        %v2710 = vunpack.c.l.b16 %v2678
        %v2711 = vunpack.c.l.b16 %v2679
        %v2712 = vunpack.c.l.b16 %v2680
        %v2713 = vunpack.c.l.b16 %v2681
        %v2714 = vunpack.c.l.b16 %v2682
        %v2715 = vunpack.c.l.b16 %v2683
        %v2716 = vunpack.c.l.b16 %v2684
        %v2717 = vunpack.c.l.b16 %v2685
        %v2718 = vpack.c.b16 %v2703, %v2702
        %v2719 = vpack.c.b16 %v2705, %v2704
        %v2720 = vpack.c.b16 %v2707, %v2706
        %v2721 = vpack.c.b16 %v2709, %v2708
        %v2722 = vpack.c.b16 %v2711, %v2710
        %v2723 = vpack.c.b16 %v2713, %v2712
        %v2724 = vpack.c.b16 %v2715, %v2714
        %v2725 = vpack.c.b16 %v2717, %v2716
        %2734 = vmatprep.subr.bf16.mxu0 0
        %2735 = vmatpush1.bf16.msra.mxu0 %v2718
        %2736 = vmatprep.subr.bf16.mxu0 0
        %2737 = vmatpush1.bf16.msra.mxu0 %v2719
        %2738 = vmatprep.subr.bf16.mxu0 0
        %2739 = vmatpush1.bf16.msra.mxu0 %v2720
        %2740 = vmatprep.subr.bf16.mxu0 0
        %2741 = vmatpush1.bf16.msra.mxu0 %v2721
        %2742 = vmatprep.subr.bf16.mxu0 0
        %2743 = vmatpush1.bf16.msra.mxu0 %v2722
        %2744 = vmatprep.subr.bf16.mxu0 0
        %2745 = vmatpush1.bf16.msra.mxu0 %v2723
        %2746 = vmatprep.subr.bf16.mxu0 0
        %2747 = vmatpush1.bf16.msra.mxu0 %v2724
        %2748 = vmatprep.subr.bf16.mxu0 0
        %2749 = vmatpush1.bf16.msra.mxu0 %v2725
        %2750 = vmatprep.subr.bf16.mxu0 0
        %2751 = vmatpush1.bf16.msra.mxu0 0
        %2752 = vmatprep.subr.bf16.mxu0 0
        %2753 = vmatpush1.bf16.msra.mxu0 0
        %2754 = vmatprep.subr.bf16.mxu0 0
        %2755 = vmatpush1.bf16.msra.mxu0 0
        %2756 = vmatprep.subr.bf16.mxu0 0
        %2757 = vmatpush1.bf16.msra.mxu0 0
        %2758 = vmatprep.subr.bf16.mxu0 0
        %2759 = vmatpush1.bf16.msra.mxu0 0
        %2760 = vmatprep.subr.bf16.mxu0 0
        %2761 = vmatpush1.bf16.msra.mxu0 0
        %2762 = vmatprep.subr.bf16.mxu0 0
        %2763 = vmatpush1.bf16.msra.mxu0 0
        %2764 = vmatprep.subr.bf16.mxu0 0
        %2765 = vmatpush1.bf16.msra.mxu0 0
        %2766 = vmatprep.mubr.bf16.mxu0 0
        %2767 = vmatmul.mubr.bf16.gmra.mrb[0].mxu0 %v2661
        %v2768 = vpop.f32.mrb[0].mxu0
        %v2769 = vadd.f32 0.0, %v2768
        %v2770 = vpop.f32.mrb[0].mxu0
        %v2771 = vpop.f32.mrb[0].mxu0
        %v2772 = vadd.f32 0.0, %v2771
        %v2773 = vpop.f32.mrb[0].mxu0
        %2774 = vmatprep.mubr.bf16.mxu0 0
        %2775 = vmatmul.mubr.bf16.gmra.mrb[0].mxu0 %v2662
        %v2776 = vpop.f32.mrb[0].mxu0
        %v2777 = vadd.f32 0.0, %v2776
        %v2778 = vpop.f32.mrb[0].mxu0
        %v2779 = vpop.f32.mrb[0].mxu0
        %v2780 = vadd.f32 0.0, %v2779
        %v2781 = vpop.f32.mrb[0].mxu0
        %2782 = vmatprep.mubr.bf16.mxu0 0
        %2783 = vmatmul.mubr.bf16.gmra.mrb[0].mxu0 %v2663
        %v2784 = vpop.f32.mrb[0].mxu0
        %v2785 = vadd.f32 0.0, %v2784
        %v2786 = vpop.f32.mrb[0].mxu0
        %v2787 = vpop.f32.mrb[0].mxu0
        %v2788 = vadd.f32 0.0, %v2787
        %v2789 = vpop.f32.mrb[0].mxu0
        %2790 = vmatprep.mubr.bf16.mxu0 0
        %2791 = vmatmul.mubr.bf16.gmra.mrb[0].mxu0 %v2664
        %v2792 = vpop.f32.mrb[0].mxu0
        %v2793 = vadd.f32 0.0, %v2792
        %v2794 = vpop.f32.mrb[0].mxu0
        %v2795 = vpop.f32.mrb[0].mxu0
        %v2796 = vadd.f32 0.0, %v2795
        %v2797 = vpop.f32.mrb[0].mxu0
        %2798 = vmatprep.mubr.bf16.mxu0 0
        %2799 = vmatmul.mubr.bf16.gmra.mrb[0].mxu0 %v2665
        %v2800 = vpop.f32.mrb[0].mxu0
        %v2801 = vadd.f32 0.0, %v2800
        %v2802 = vpop.f32.mrb[0].mxu0
        %v2803 = vpop.f32.mrb[0].mxu0
        %v2804 = vadd.f32 0.0, %v2803
        %v2805 = vpop.f32.mrb[0].mxu0
        %2806 = vmatprep.mubr.bf16.mxu0 0
        %2807 = vmatmul.mubr.bf16.gmra.mrb[0].mxu0 %v2666
        %v2808 = vpop.f32.mrb[0].mxu0
        %v2809 = vadd.f32 0.0, %v2808
        %v2810 = vpop.f32.mrb[0].mxu0
        %v2811 = vpop.f32.mrb[0].mxu0
        %v2812 = vadd.f32 0.0, %v2811
        %v2813 = vpop.f32.mrb[0].mxu0
        %2814 = vmatprep.mubr.bf16.mxu0 0
        %2815 = vmatmul.mubr.bf16.gmra.mrb[0].mxu0 %v2667
        %v2816 = vpop.f32.mrb[0].mxu0
        %v2817 = vadd.f32 0.0, %v2816
        %v2818 = vpop.f32.mrb[0].mxu0
        %v2819 = vpop.f32.mrb[0].mxu0
        %v2820 = vadd.f32 0.0, %v2819
        %v2821 = vpop.f32.mrb[0].mxu0
        %2822 = vmatprep.mubr.bf16.mxu0 0
        %2823 = vmatmul.mubr.bf16.gmra.mrb[0].mxu0 %v2668
        %v2824 = vpop.f32.mrb[0].mxu0
        %v2825 = vadd.f32 0.0, %v2824
        %v2826 = vpop.f32.mrb[0].mxu0
        %v2827 = vpop.f32.mrb[0].mxu0
        %v2828 = vadd.f32 0.0, %v2827
        %v2829 = vpop.f32.mrb[0].mxu0
        %2830 = vdwg.mxu0
        %v2831 = vadd.f32 %v2599, %v2769
        %v2832 = vadd.f32 %v2602, %v2772
        %v2833 = vadd.f32 %v2607, %v2777
        %v2834 = vadd.f32 %v2610, %v2780
        %v2835 = vadd.f32 %v2615, %v2785
        %v2836 = vadd.f32 %v2618, %v2788
        %v2837 = vadd.f32 %v2623, %v2793
        %v2838 = vadd.f32 %v2626, %v2796
        %v2839 = vadd.f32 %v2631, %v2801
        %v2840 = vadd.f32 %v2634, %v2804
        %v2841 = vadd.f32 %v2639, %v2809
        %v2842 = vadd.f32 %v2642, %v2812
        %v2843 = vadd.f32 %v2647, %v2817
        %v2844 = vadd.f32 %v2650, %v2820
        %v2845 = vadd.f32 %v2655, %v2825
        %v2846 = vadd.f32 %v2658, %v2828
        %v2847 = vpack.c.bf16 %v2342, %v2341
        %v2848 = vpack.c.bf16 %v2344, %v2343
        %v2849 = vpack.c.bf16 %v2346, %v2345
        %v2850 = vpack.c.bf16 %v2348, %v2347
        %v2851 = vpack.c.bf16 %v2350, %v2349
        %v2852 = vpack.c.bf16 %v2352, %v2351
        %v2853 = vpack.c.bf16 %v2354, %v2353
        %v2854 = vpack.c.bf16 %v2356, %v2355
        %s2855 = scalar_lea.vmem %s3, 128
        %v2856 = vld [vmem:[%s2855] sm:$0xf]
        %v2857 = vld [vmem:[%s2855 + $0x4] sm:$0xf]
        %v2858 = vld [vmem:[%s2855 + $0x8] sm:$0xf]
        %v2859 = vld [vmem:[%s2855 + $0xc] sm:$0xf]
        %v2860 = vld [vmem:[%s2855 + $0x10] sm:$0xf]
        %v2861 = vld [vmem:[%s2855 + $0x14] sm:$0xf]
        %v2862 = vld [vmem:[%s2855 + $0x18] sm:$0xf]
        %v2863 = vld [vmem:[%s2855 + $0x1c] sm:$0xf]
        %v2864 = vld [vmem:[%s2855 + $0x20] sm:$0xf]
        %v2865 = vld [vmem:[%s2855 + $0x24] sm:$0xf]
        %v2866 = vld [vmem:[%s2855 + $0x28] sm:$0xf]
        %v2867 = vld [vmem:[%s2855 + $0x2c] sm:$0xf]
        %v2868 = vld [vmem:[%s2855 + $0x30] sm:$0xf]
        %v2869 = vld [vmem:[%s2855 + $0x34] sm:$0xf]
        %v2870 = vld [vmem:[%s2855 + $0x38] sm:$0xf]
        %v2871 = vld [vmem:[%s2855 + $0x3c] sm:$0xf]
        %v2888 = vunpack.c.l.b16 %v2856
        %v2889 = vunpack.c.l.b16 %v2857
        %v2890 = vunpack.c.l.b16 %v2858
        %v2891 = vunpack.c.l.b16 %v2859
        %v2892 = vunpack.c.l.b16 %v2860
        %v2893 = vunpack.c.l.b16 %v2861
        %v2894 = vunpack.c.l.b16 %v2862
        %v2895 = vunpack.c.l.b16 %v2863
        %v2896 = vunpack.c.l.b16 %v2864
        %v2897 = vunpack.c.l.b16 %v2865
        %v2898 = vunpack.c.l.b16 %v2866
        %v2899 = vunpack.c.l.b16 %v2867
        %v2900 = vunpack.c.l.b16 %v2868
        %v2901 = vunpack.c.l.b16 %v2869
        %v2902 = vunpack.c.l.b16 %v2870
        %v2903 = vunpack.c.l.b16 %v2871
        %v2904 = vpack.c.b16 %v2889, %v2888
        %v2905 = vpack.c.b16 %v2891, %v2890
        %v2906 = vpack.c.b16 %v2893, %v2892
        %v2907 = vpack.c.b16 %v2895, %v2894
        %v2908 = vpack.c.b16 %v2897, %v2896
        %v2909 = vpack.c.b16 %v2899, %v2898
        %v2910 = vpack.c.b16 %v2901, %v2900
        %v2911 = vpack.c.b16 %v2903, %v2902
        %2920 = vmatprep.subr.bf16.mxu0 0
        %2921 = vmatpush1.bf16.msra.mxu0 %v2904
        %2922 = vmatprep.subr.bf16.mxu0 0
        %2923 = vmatpush1.bf16.msra.mxu0 %v2905
        %2924 = vmatprep.subr.bf16.mxu0 0
        %2925 = vmatpush1.bf16.msra.mxu0 %v2906
        %2926 = vmatprep.subr.bf16.mxu0 0
        %2927 = vmatpush1.bf16.msra.mxu0 %v2907
        %2928 = vmatprep.subr.bf16.mxu0 0
        %2929 = vmatpush1.bf16.msra.mxu0 %v2908
        %2930 = vmatprep.subr.bf16.mxu0 0
        %2931 = vmatpush1.bf16.msra.mxu0 %v2909
        %2932 = vmatprep.subr.bf16.mxu0 0
        %2933 = vmatpush1.bf16.msra.mxu0 %v2910
        %2934 = vmatprep.subr.bf16.mxu0 0
        %2935 = vmatpush1.bf16.msra.mxu0 %v2911
        %2936 = vmatprep.subr.bf16.mxu0 0
        %2937 = vmatpush1.bf16.msra.mxu0 0
        %2938 = vmatprep.subr.bf16.mxu0 0
        %2939 = vmatpush1.bf16.msra.mxu0 0
        %2940 = vmatprep.subr.bf16.mxu0 0
        %2941 = vmatpush1.bf16.msra.mxu0 0
        %2942 = vmatprep.subr.bf16.mxu0 0
        %2943 = vmatpush1.bf16.msra.mxu0 0
        %2944 = vmatprep.subr.bf16.mxu0 0
        %2945 = vmatpush1.bf16.msra.mxu0 0
        %2946 = vmatprep.subr.bf16.mxu0 0
        %2947 = vmatpush1.bf16.msra.mxu0 0
        %2948 = vmatprep.subr.bf16.mxu0 0
        %2949 = vmatpush1.bf16.msra.mxu0 0
        %2950 = vmatprep.subr.bf16.mxu0 0
        %2951 = vmatpush1.bf16.msra.mxu0 0
        %2952 = vmatprep.mubr.bf16.mxu0 0
        %2953 = vmatmul.mubr.bf16.gmra.mrb[0].mxu0 %v2847
        %v2954 = vpop.f32.mrb[0].mxu0
        %v2955 = vadd.f32 0.0, %v2954
        %v2956 = vpop.f32.mrb[0].mxu0
        %v2957 = vpop.f32.mrb[0].mxu0
        %v2958 = vadd.f32 0.0, %v2957
        %v2959 = vpop.f32.mrb[0].mxu0
        %2960 = vmatprep.mubr.bf16.mxu0 0
        %2961 = vmatmul.mubr.bf16.gmra.mrb[0].mxu0 %v2848
        %v2962 = vpop.f32.mrb[0].mxu0
        %v2963 = vadd.f32 0.0, %v2962
        %v2964 = vpop.f32.mrb[0].mxu0
        %v2965 = vpop.f32.mrb[0].mxu0
        %v2966 = vadd.f32 0.0, %v2965
        %v2967 = vpop.f32.mrb[0].mxu0
        %2968 = vmatprep.mubr.bf16.mxu0 0
        %2969 = vmatmul.mubr.bf16.gmra.mrb[0].mxu0 %v2849
        %v2970 = vpop.f32.mrb[0].mxu0
        %v2971 = vadd.f32 0.0, %v2970
        %v2972 = vpop.f32.mrb[0].mxu0
        %v2973 = vpop.f32.mrb[0].mxu0
        %v2974 = vadd.f32 0.0, %v2973
        %v2975 = vpop.f32.mrb[0].mxu0
        %2976 = vmatprep.mubr.bf16.mxu0 0
        %2977 = vmatmul.mubr.bf16.gmra.mrb[0].mxu0 %v2850
        %v2978 = vpop.f32.mrb[0].mxu0
        %v2979 = vadd.f32 0.0, %v2978
        %v2980 = vpop.f32.mrb[0].mxu0
        %v2981 = vpop.f32.mrb[0].mxu0
        %v2982 = vadd.f32 0.0, %v2981
        %v2983 = vpop.f32.mrb[0].mxu0
        %2984 = vmatprep.mubr.bf16.mxu0 0
        %2985 = vmatmul.mubr.bf16.gmra.mrb[0].mxu0 %v2851
        %v2986 = vpop.f32.mrb[0].mxu0
        %v2987 = vadd.f32 0.0, %v2986
        %v2988 = vpop.f32.mrb[0].mxu0
        %v2989 = vpop.f32.mrb[0].mxu0
        %v2990 = vadd.f32 0.0, %v2989
        %v2991 = vpop.f32.mrb[0].mxu0
        %2992 = vmatprep.mubr.bf16.mxu0 0
        %2993 = vmatmul.mubr.bf16.gmra.mrb[0].mxu0 %v2852
        %v2994 = vpop.f32.mrb[0].mxu0
        %v2995 = vadd.f32 0.0, %v2994
        %v2996 = vpop.f32.mrb[0].mxu0
        %v2997 = vpop.f32.mrb[0].mxu0
        %v2998 = vadd.f32 0.0, %v2997
        %v2999 = vpop.f32.mrb[0].mxu0
        %3000 = vmatprep.mubr.bf16.mxu0 0
        %3001 = vmatmul.mubr.bf16.gmra.mrb[0].mxu0 %v2853
        %v3002 = vpop.f32.mrb[0].mxu0
        %v3003 = vadd.f32 0.0, %v3002
        %v3004 = vpop.f32.mrb[0].mxu0
        %v3005 = vpop.f32.mrb[0].mxu0
        %v3006 = vadd.f32 0.0, %v3005
        %v3007 = vpop.f32.mrb[0].mxu0
        %3008 = vmatprep.mubr.bf16.mxu0 0
        %3009 = vmatmul.mubr.bf16.gmra.mrb[0].mxu0 %v2854
        %v3010 = vpop.f32.mrb[0].mxu0
        %v3011 = vadd.f32 0.0, %v3010
        %v3012 = vpop.f32.mrb[0].mxu0
        %v3013 = vpop.f32.mrb[0].mxu0
        %v3014 = vadd.f32 0.0, %v3013
        %v3015 = vpop.f32.mrb[0].mxu0
        %3016 = vdwg.mxu0
        %v3017 = vadd.f32 %v2831, %v2955
        %v3018 = vadd.f32 %v2832, %v2958
        %v3019 = vadd.f32 %v2833, %v2963
        %v3020 = vadd.f32 %v2834, %v2966
        %v3021 = vadd.f32 %v2835, %v2971
        %v3022 = vadd.f32 %v2836, %v2974
        %v3023 = vadd.f32 %v2837, %v2979
        %v3024 = vadd.f32 %v2838, %v2982
        %v3025 = vadd.f32 %v2839, %v2987
        %v3026 = vadd.f32 %v2840, %v2990
        %v3027 = vadd.f32 %v2841, %v2995
        %v3028 = vadd.f32 %v2842, %v2998
        %v3029 = vadd.f32 %v2843, %v3003
        %v3030 = vadd.f32 %v2844, %v3006
        %v3031 = vadd.f32 %v2845, %v3011
        %v3032 = vadd.f32 %v2846, %v3014
        %v3033 = vpack.c.bf16 %v2470, %v2469
        %v3034 = vpack.c.bf16 %v2472, %v2471
        %v3035 = vpack.c.bf16 %v2474, %v2473
        %v3036 = vpack.c.bf16 %v2476, %v2475
        %v3037 = vpack.c.bf16 %v2478, %v2477
        %v3038 = vpack.c.bf16 %v2480, %v2479
        %v3039 = vpack.c.bf16 %v2482, %v2481
        %v3040 = vpack.c.bf16 %v2484, %v2483
        %s3041 = scalar_lea.vmem %s3, 192
        %v3042 = vld [vmem:[%s3041] sm:$0xf]
        %v3043 = vld [vmem:[%s3041 + $0x4] sm:$0xf]
        %v3044 = vld [vmem:[%s3041 + $0x8] sm:$0xf]
        %v3045 = vld [vmem:[%s3041 + $0xc] sm:$0xf]
        %v3046 = vld [vmem:[%s3041 + $0x10] sm:$0xf]
        %v3047 = vld [vmem:[%s3041 + $0x14] sm:$0xf]
        %v3048 = vld [vmem:[%s3041 + $0x18] sm:$0xf]
        %v3049 = vld [vmem:[%s3041 + $0x1c] sm:$0xf]
        %v3050 = vld [vmem:[%s3041 + $0x20] sm:$0xf]
        %v3051 = vld [vmem:[%s3041 + $0x24] sm:$0xf]
        %v3052 = vld [vmem:[%s3041 + $0x28] sm:$0xf]
        %v3053 = vld [vmem:[%s3041 + $0x2c] sm:$0xf]
        %v3054 = vld [vmem:[%s3041 + $0x30] sm:$0xf]
        %v3055 = vld [vmem:[%s3041 + $0x34] sm:$0xf]
        %v3056 = vld [vmem:[%s3041 + $0x38] sm:$0xf]
        %v3057 = vld [vmem:[%s3041 + $0x3c] sm:$0xf]
        %v3074 = vunpack.c.l.b16 %v3042
        %v3075 = vunpack.c.l.b16 %v3043
        %v3076 = vunpack.c.l.b16 %v3044
        %v3077 = vunpack.c.l.b16 %v3045
        %v3078 = vunpack.c.l.b16 %v3046
        %v3079 = vunpack.c.l.b16 %v3047
        %v3080 = vunpack.c.l.b16 %v3048
        %v3081 = vunpack.c.l.b16 %v3049
        %v3082 = vunpack.c.l.b16 %v3050
        %v3083 = vunpack.c.l.b16 %v3051
        %v3084 = vunpack.c.l.b16 %v3052
        %v3085 = vunpack.c.l.b16 %v3053
        %v3086 = vunpack.c.l.b16 %v3054
        %v3087 = vunpack.c.l.b16 %v3055
        %v3088 = vunpack.c.l.b16 %v3056
        %v3089 = vunpack.c.l.b16 %v3057
        %v3090 = vpack.c.b16 %v3075, %v3074
        %v3091 = vpack.c.b16 %v3077, %v3076
        %v3092 = vpack.c.b16 %v3079, %v3078
        %v3093 = vpack.c.b16 %v3081, %v3080
        %v3094 = vpack.c.b16 %v3083, %v3082
        %v3095 = vpack.c.b16 %v3085, %v3084
        %v3096 = vpack.c.b16 %v3087, %v3086
        %v3097 = vpack.c.b16 %v3089, %v3088
        %3106 = vmatprep.subr.bf16.mxu0 0
        %3107 = vmatpush1.bf16.msra.mxu0 %v3090
        %3108 = vmatprep.subr.bf16.mxu0 0
        %3109 = vmatpush1.bf16.msra.mxu0 %v3091
        %3110 = vmatprep.subr.bf16.mxu0 0
        %3111 = vmatpush1.bf16.msra.mxu0 %v3092
        %3112 = vmatprep.subr.bf16.mxu0 0
        %3113 = vmatpush1.bf16.msra.mxu0 %v3093
        %3114 = vmatprep.subr.bf16.mxu0 0
        %3115 = vmatpush1.bf16.msra.mxu0 %v3094
        %3116 = vmatprep.subr.bf16.mxu0 0
        %3117 = vmatpush1.bf16.msra.mxu0 %v3095
        %3118 = vmatprep.subr.bf16.mxu0 0
        %3119 = vmatpush1.bf16.msra.mxu0 %v3096
        %3120 = vmatprep.subr.bf16.mxu0 0
        %3121 = vmatpush1.bf16.msra.mxu0 %v3097
        %3122 = vmatprep.subr.bf16.mxu0 0
        %3123 = vmatpush1.bf16.msra.mxu0 0
        %3124 = vmatprep.subr.bf16.mxu0 0
        %3125 = vmatpush1.bf16.msra.mxu0 0
        %3126 = vmatprep.subr.bf16.mxu0 0
        %3127 = vmatpush1.bf16.msra.mxu0 0
        %3128 = vmatprep.subr.bf16.mxu0 0
        %3129 = vmatpush1.bf16.msra.mxu0 0
        %3130 = vmatprep.subr.bf16.mxu0 0
        %3131 = vmatpush1.bf16.msra.mxu0 0
        %3132 = vmatprep.subr.bf16.mxu0 0
        %3133 = vmatpush1.bf16.msra.mxu0 0
        %3134 = vmatprep.subr.bf16.mxu0 0
        %3135 = vmatpush1.bf16.msra.mxu0 0
        %3136 = vmatprep.subr.bf16.mxu0 0
        %3137 = vmatpush1.bf16.msra.mxu0 0
        %3138 = vmatprep.mubr.bf16.mxu0 0
        %3139 = vmatmul.mubr.bf16.gmra.mrb[0].mxu0 %v3033
        %v3140 = vpop.f32.mrb[0].mxu0
        %v3141 = vadd.f32 0.0, %v3140
        %v3142 = vpop.f32.mrb[0].mxu0
        %v3143 = vpop.f32.mrb[0].mxu0
        %v3144 = vadd.f32 0.0, %v3143
        %v3145 = vpop.f32.mrb[0].mxu0
        %3146 = vmatprep.mubr.bf16.mxu0 0
        %3147 = vmatmul.mubr.bf16.gmra.mrb[0].mxu0 %v3034
        %v3148 = vpop.f32.mrb[0].mxu0
        %v3149 = vadd.f32 0.0, %v3148
        %v3150 = vpop.f32.mrb[0].mxu0
        %v3151 = vpop.f32.mrb[0].mxu0
        %v3152 = vadd.f32 0.0, %v3151
        %v3153 = vpop.f32.mrb[0].mxu0
        %3154 = vmatprep.mubr.bf16.mxu0 0
        %3155 = vmatmul.mubr.bf16.gmra.mrb[0].mxu0 %v3035
        %v3156 = vpop.f32.mrb[0].mxu0
        %v3157 = vadd.f32 0.0, %v3156
        %v3158 = vpop.f32.mrb[0].mxu0
        %v3159 = vpop.f32.mrb[0].mxu0
        %v3160 = vadd.f32 0.0, %v3159
        %v3161 = vpop.f32.mrb[0].mxu0
        %3162 = vmatprep.mubr.bf16.mxu0 0
        %3163 = vmatmul.mubr.bf16.gmra.mrb[0].mxu0 %v3036
        %v3164 = vpop.f32.mrb[0].mxu0
        %v3165 = vadd.f32 0.0, %v3164
        %v3166 = vpop.f32.mrb[0].mxu0
        %v3167 = vpop.f32.mrb[0].mxu0
        %v3168 = vadd.f32 0.0, %v3167
        %v3169 = vpop.f32.mrb[0].mxu0
        %3170 = vmatprep.mubr.bf16.mxu0 0
        %3171 = vmatmul.mubr.bf16.gmra.mrb[0].mxu0 %v3037
        %v3172 = vpop.f32.mrb[0].mxu0
        %v3173 = vadd.f32 0.0, %v3172
        %v3174 = vpop.f32.mrb[0].mxu0
        %v3175 = vpop.f32.mrb[0].mxu0
        %v3176 = vadd.f32 0.0, %v3175
        %v3177 = vpop.f32.mrb[0].mxu0
        %3178 = vmatprep.mubr.bf16.mxu0 0
        %3179 = vmatmul.mubr.bf16.gmra.mrb[0].mxu0 %v3038
        %v3180 = vpop.f32.mrb[0].mxu0
        %v3181 = vadd.f32 0.0, %v3180
        %v3182 = vpop.f32.mrb[0].mxu0
        %v3183 = vpop.f32.mrb[0].mxu0
        %v3184 = vadd.f32 0.0, %v3183
        %v3185 = vpop.f32.mrb[0].mxu0
        %3186 = vmatprep.mubr.bf16.mxu0 0
        %3187 = vmatmul.mubr.bf16.gmra.mrb[0].mxu0 %v3039
        %v3188 = vpop.f32.mrb[0].mxu0
        %v3189 = vadd.f32 0.0, %v3188
        %v3190 = vpop.f32.mrb[0].mxu0
        %v3191 = vpop.f32.mrb[0].mxu0
        %v3192 = vadd.f32 0.0, %v3191
        %v3193 = vpop.f32.mrb[0].mxu0
        %3194 = vmatprep.mubr.bf16.mxu0 0
        %3195 = vmatmul.mubr.bf16.gmra.mrb[0].mxu0 %v3040
        %v3196 = vpop.f32.mrb[0].mxu0
        %v3197 = vadd.f32 0.0, %v3196
        %v3198 = vpop.f32.mrb[0].mxu0
        %v3199 = vpop.f32.mrb[0].mxu0
        %v3200 = vadd.f32 0.0, %v3199
        %v3201 = vpop.f32.mrb[0].mxu0
        %3202 = vdwg.mxu0
        %v3203 = vadd.f32 %v3017, %v3141
        %v3204 = vadd.f32 %v3018, %v3144
        %v3205 = vadd.f32 %v3019, %v3149
        %v3206 = vadd.f32 %v3020, %v3152
        %v3207 = vadd.f32 %v3021, %v3157
        %v3208 = vadd.f32 %v3022, %v3160
        %v3209 = vadd.f32 %v3023, %v3165
        %v3210 = vadd.f32 %v3024, %v3168
        %v3211 = vadd.f32 %v3025, %v3173
        %v3212 = vadd.f32 %v3026, %v3176
        %v3213 = vadd.f32 %v3027, %v3181
        %v3214 = vadd.f32 %v3028, %v3184
        %v3215 = vadd.f32 %v3029, %v3189
        %v3216 = vadd.f32 %v3030, %v3192
        %v3217 = vadd.f32 %v3031, %v3197
        %v3218 = vadd.f32 %v3032, %v3200
        %v3219 = vxor.u32 %v3203, 2147483648
        %v3220 = vxor.u32 %v3204, 2147483648
        %v3221 = vxor.u32 %v3205, 2147483648
        %v3222 = vxor.u32 %v3206, 2147483648
        %v3223 = vxor.u32 %v3207, 2147483648
        %v3224 = vxor.u32 %v3208, 2147483648
        %v3225 = vxor.u32 %v3209, 2147483648
        %v3226 = vxor.u32 %v3210, 2147483648
        %v3227 = vxor.u32 %v3211, 2147483648
        %v3228 = vxor.u32 %v3212, 2147483648
        %v3229 = vxor.u32 %v3213, 2147483648
        %v3230 = vxor.u32 %v3214, 2147483648
        %v3231 = vxor.u32 %v3215, 2147483648
        %v3232 = vxor.u32 %v3216, 2147483648
        %v3233 = vxor.u32 %v3217, 2147483648
        %v3234 = vxor.u32 %v3218, 2147483648
        %v3235 = vmul.f32 %v3219, 1.442695
        %v3236 = vpow.pop %v3235
        %v3237 = vmul.f32 %v3220, 1.442695
        %v3238 = vpow.pop %v3237
        %v3239 = vmul.f32 %v3221, 1.442695
        %v3240 = vpow.pop %v3239
        %v3241 = vmul.f32 %v3222, 1.442695
        %v3242 = vpow.pop %v3241
        %v3243 = vmul.f32 %v3223, 1.442695
        %v3244 = vpow.pop %v3243
        %v3245 = vmul.f32 %v3224, 1.442695
        %v3246 = vpow.pop %v3245
        %v3247 = vmul.f32 %v3225, 1.442695
        %v3248 = vpow.pop %v3247
        %v3249 = vmul.f32 %v3226, 1.442695
        %v3250 = vpow.pop %v3249
        %v3251 = vmul.f32 %v3227, 1.442695
        %v3252 = vpow.pop %v3251
        %v3253 = vmul.f32 %v3228, 1.442695
        %v3254 = vpow.pop %v3253
        %v3255 = vmul.f32 %v3229, 1.442695
        %v3256 = vpow.pop %v3255
        %v3257 = vmul.f32 %v3230, 1.442695
        %v3258 = vpow.pop %v3257
        %v3259 = vmul.f32 %v3231, 1.442695
        %v3260 = vpow.pop %v3259
        %v3261 = vmul.f32 %v3232, 1.442695
        %v3262 = vpow.pop %v3261
        %v3263 = vmul.f32 %v3233, 1.442695
        %v3264 = vpow.pop %v3263
        %v3265 = vmul.f32 %v3234, 1.442695
        %v3266 = vpow.pop %v3265
        %v3267 = vadd.f32 %v3236, 1.0
        %v3268 = vadd.f32 %v3238, 1.0
        %v3269 = vadd.f32 %v3240, 1.0
        %v3270 = vadd.f32 %v3242, 1.0
        %v3271 = vadd.f32 %v3244, 1.0
        %v3272 = vadd.f32 %v3246, 1.0
        %v3273 = vadd.f32 %v3248, 1.0
        %v3274 = vadd.f32 %v3250, 1.0
        %v3275 = vadd.f32 %v3252, 1.0
        %v3276 = vadd.f32 %v3254, 1.0
        %v3277 = vadd.f32 %v3256, 1.0
        %v3278 = vadd.f32 %v3258, 1.0
        %v3279 = vadd.f32 %v3260, 1.0
        %v3280 = vadd.f32 %v3262, 1.0
        %v3281 = vadd.f32 %v3264, 1.0
        %v3282 = vadd.f32 %v3266, 1.0
        %v3283 = vrcp.pop %v3267
        %v3284 = vmul.f32 1.0, %v3283
        %v3285 = vrcp.pop %v3268
        %v3286 = vmul.f32 1.0, %v3285
        %v3287 = vrcp.pop %v3269
        %v3288 = vmul.f32 1.0, %v3287
        %v3289 = vrcp.pop %v3270
        %v3290 = vmul.f32 1.0, %v3289
        %v3291 = vrcp.pop %v3271
        %v3292 = vmul.f32 1.0, %v3291
        %v3293 = vrcp.pop %v3272
        %v3294 = vmul.f32 1.0, %v3293
        %v3295 = vrcp.pop %v3273
        %v3296 = vmul.f32 1.0, %v3295
        %v3297 = vrcp.pop %v3274
        %v3298 = vmul.f32 1.0, %v3297
        %v3299 = vrcp.pop %v3275
        %v3300 = vmul.f32 1.0, %v3299
        %v3301 = vrcp.pop %v3276
        %v3302 = vmul.f32 1.0, %v3301
        %v3303 = vrcp.pop %v3277
        %v3304 = vmul.f32 1.0, %v3303
        %v3305 = vrcp.pop %v3278
        %v3306 = vmul.f32 1.0, %v3305
        %v3307 = vrcp.pop %v3279
        %v3308 = vmul.f32 1.0, %v3307
        %v3309 = vrcp.pop %v3280
        %v3310 = vmul.f32 1.0, %v3309
        %v3311 = vrcp.pop %v3281
        %v3312 = vmul.f32 1.0, %v3311
        %v3313 = vrcp.pop %v3282
        %v3314 = vmul.f32 1.0, %v3313
        %v3315 = vmul.f32 %v3203, %v3284
        %v3316 = vmul.f32 %v3204, %v3286
        %v3317 = vmul.f32 %v3205, %v3288
        %v3318 = vmul.f32 %v3206, %v3290
        %v3319 = vmul.f32 %v3207, %v3292
        %v3320 = vmul.f32 %v3208, %v3294
        %v3321 = vmul.f32 %v3209, %v3296
        %v3322 = vmul.f32 %v3210, %v3298
        %v3323 = vmul.f32 %v3211, %v3300
        %v3324 = vmul.f32 %v3212, %v3302
        %v3325 = vmul.f32 %v3213, %v3304
        %v3326 = vmul.f32 %v3214, %v3306
        %v3327 = vmul.f32 %v3215, %v3308
        %v3328 = vmul.f32 %v3216, %v3310
        %v3329 = vmul.f32 %v3217, %v3312
        %v3330 = vmul.f32 %v3218, %v3314
        %3331 = vst [vmem:[%s231] sm:$0xff] %v3315
        %3332 = vst [vmem:[%s231 + $0x8] sm:$0xff] %v3316
        %3333 = vst [vmem:[%s231 + $0x10] sm:$0xff] %v3317
        %3334 = vst [vmem:[%s231 + $0x18] sm:$0xff] %v3318
        %3335 = vst [vmem:[%s231 + $0x20] sm:$0xff] %v3319
        %3336 = vst [vmem:[%s231 + $0x28] sm:$0xff] %v3320
        %3337 = vst [vmem:[%s231 + $0x30] sm:$0xff] %v3321
        %3338 = vst [vmem:[%s231 + $0x38] sm:$0xff] %v3322
        %3339 = vst [vmem:[%s231 + $0x40] sm:$0xff] %v3323
        %3340 = vst [vmem:[%s231 + $0x48] sm:$0xff] %v3324
        %3341 = vst [vmem:[%s231 + $0x50] sm:$0xff] %v3325
        %3342 = vst [vmem:[%s231 + $0x58] sm:$0xff] %v3326
        %3343 = vst [vmem:[%s231 + $0x60] sm:$0xff] %v3327
        %3344 = vst [vmem:[%s231 + $0x68] sm:$0xff] %v3328
        %3345 = vst [vmem:[%s231 + $0x70] sm:$0xff] %v3329
        %3346 = vst [vmem:[%s231 + $0x78] sm:$0xff] %v3330
        %s3347 = sand.u32 %s151, 1
        %s3348 = scalar_lea.sflag [#allocation3], %s3347
        %s3349 = sand.u32 %s151, 1
        %s3350 = smul.addr %s3349, 128
        %s3351 = scalar_lea.vmem [#allocation2], %s3350
        // Predicated region
        $region41: #{tpu_custom_call.1} parent=39 // pred_check
          %p3352 = pneg %p161
        $region42: #{tpu_custom_call.1} parent=39 // pred_check_branch
          %3354 = sbr.rel (%p3352) target = $region44
        $region43: #{tpu_custom_call.1} parent=39 // pred_region
          %s3355 = smul.u32 8, %s24
          %s3357 = ssub.s32 2048, 2048
          %3358 = vsyncadd %s3348, %s3357
          %s3359 = smul.addr %s3355, 2
          %s3360 = smul.addr %s23, 32
          %s3361 = sadd.s32 %s3359, %s3360
          %s3362 = smul.addr %s3361, 128
          %s3363 = scalar_lea.hbm %s5, %s3362
          %s3364 = sshll.u32 %s3351, 4
          %s3365 = int_to_ptr.vmem [resolvable:$true] %s3364
          %3370 = dma.vmem_to_hbm [thread:$0]  %s3365, 2048, %s3363, %s3348, 128, 128, 8
        $region44: #{tpu_custom_call.1} parent=39 // pred_fallthru
          _
      $region40: #{tpu_custom_call.1} parent=5 // pred_fallthru
        _
      %p3371 = scmp.le.s32.totalorder 2, %s14
      // Predicated region
      $region45: #{tpu_custom_call.1} parent=5 // pred_check
        %p3372 = pneg %p3371
      $region46: #{tpu_custom_call.1} parent=5 // pred_check_branch
        %3374 = sbr.rel (%p3372) target = $region48
      $region47: #{tpu_custom_call.1} parent=5 // pred_region
        %s3375 = ssub.s32 %s14, 2
        // Predicated region
        $region49: #{tpu_custom_call.1} parent=47 // pred_check
          %p3376 = pneg %p167
        $region50: #{tpu_custom_call.1} parent=47 // pred_check_branch
          %3378 = sbr.rel (%p3376) target = $region52
        $region51: #{tpu_custom_call.1} parent=47 // pred_region
          %s3379 = sand.u32 %s152, 1
          %s3380 = scalar_lea.sflag [#allocation3], %s3379
          %s3381 = sand.u32 %s152, 1
          %s3382 = smul.addr %s3381, 128
          %s3383 = scalar_lea.vmem [#allocation2], %s3382
          %3384 = dma.done %s3380, 2048
        $region52: #{tpu_custom_call.1} parent=47 // pred_fallthru
          _
      $region48: #{tpu_custom_call.1} parent=5 // pred_fallthru
        _
    $region6: #{tpu_custom_call.1} parent=1 // loop_footer
      %s18 = sadd.s32 1, %s14
    $region7: #{tpu_custom_call.1} parent=1 // loop_footer_branch
      %13 = sbr.rel target = $region3
    $region8: #{tpu_custom_call.1} parent=1 // loop_exit
      _
    %3385 = vsyncpa [#allocation3], 1
    %s3386 = scalar_lea.sflag [#allocation3], 1
    %3387 = vsyncpa %s3386, 1

</llo_original>
